<compile_context>
chip_gen: v5e
topology: v5e:2x2
jax: 0.10.0
libtpu: 0.0.40
codegen_flags: <defaults>
</compile_context>

<pallas_src>
import math

import numpy as np

import jax
import jax.numpy as jnp
from jax import lax
from jax.experimental import pallas as pl
from jax.experimental.pallas import tpu as pltpu


def _make_encoder_kernel(n_words, embed_dim, d_attention, num_heads,
                         batch_per_block, eps=1e-5):
    N, E, D, H, Bt = n_words, embed_dim, d_attention, num_heads, batch_per_block
    T = Bt * N                                    # flat tokens per grid step
    neg_max = float(-jnp.finfo(jnp.float32).max)
    inv_ne = 1.0 / float(N * E)
    v_off = 2 * H * D                             # lane offset of fused V in packed QKV

    def tile_rows(a):
        # (N, E) -> (T, E): replicate LN affine params across the Bt batch
        # elements of this block (sublane concat, hidden under the MXU chain).
        return a if Bt == 1 else jnp.concatenate([a] * Bt, axis=0)

    def kernel(x_ref, mask_r_ref, mask_c_ref, valid_s_ref, same_f_ref,
               wqkv_ref, wf_ref, bf_ref,
               g1_ref, b1_ref, g2_ref, b2_ref,
               out_ref):
        x = x_ref[...]                            # (T, E) flat tokens of this batch block
        m_row = mask_r_ref[0]                     # (1, T) token mask, lane layout
        m_col = mask_c_ref[0]                     # (T, 1) token mask, sublane layout
        same_f = same_f_ref[...]                  # (T, T) static block-diagonal structure
        p_avg = same_f * inv_ne                   # same-batch averaging matrix for LN

        # Dynamic part of the mask only; static structure (same batch element,
        # diagonal removed) arrives precomputed.
        valid = (valid_s_ref[...] * (m_col * m_row)) > 0.0          # (T, T) bool

        # Fused QKV projection; 1/sqrt(D) folded into Q, Wo folded into V.
        qkv = jnp.dot(x, wqkv_ref[...], preferred_element_type=jnp.float32)

        # ---- multi-head attention over the whole batch block ----
        y = x                                            # residual accumulator
        for h in range(H):
            q = qkv[:, h * D:(h + 1) * D]                       # (T, D)
            k = qkv[:, (H + h) * D:(H + h + 1) * D]             # (T, D)
            v = qkv[:, v_off + h * E:v_off + (h + 1) * E]       # (T, E) = V_h @ Wo_h
            # q @ k^T without materializing a transpose (contract last dims).
            s = lax.dot_general(q, k, (((1,), (1,)), ((), ())),
                                preferred_element_type=jnp.float32)          # (T, T)
            s = jnp.where(valid, s, neg_max)              # masked_fill, as reference
            s = s - jnp.max(s, axis=-1, keepdims=True)
            p = jnp.exp(s) * same_f                       # kill cross-batch columns
            denom = jnp.sum(p, axis=-1, keepdims=True)    # fully-masked rows -> N (uniform)
            inv = pl.reciprocal(denom, approx=True)       # EUP estimate ...
            inv = inv * (2.0 - denom * inv)               # ... + one Newton step
            y = y + jnp.dot(p, v, preferred_element_type=jnp.float32) * inv

        # ---- joint (N, E) LayerNorm per batch element, single pass, fused reduce ----
        def layer_norm(z, g, b):
            zz = jnp.concatenate([z, z * z], axis=-1)                          # (T, 2E)
            r = jnp.dot(p_avg, zz, preferred_element_type=jnp.float32)         # (T, 2E)
            mu = jnp.sum(r[:, :E], axis=-1, keepdims=True)                     # (T, 1)
            msq = jnp.sum(r[:, E:], axis=-1, keepdims=True)                    # (T, 1)
            rstd = lax.rsqrt(msq - mu * mu + eps)
            return (z - mu) * rstd * g + b

        g1 = tile_rows(g1_ref[...]); b1 = tile_rows(b1_ref[...])
        g2 = tile_rows(g2_ref[...]); b2 = tile_rows(b2_ref[...])

        ln1 = layer_norm(y, g1, b1)                                            # (T, E)

        # ---- feed-forward + relu ----
        ffn = jnp.dot(ln1, wf_ref[...], preferred_element_type=jnp.float32) + bf_ref[...]
        ffn = jnp.maximum(ffn, 0.0)

        # ---- second joint LayerNorm and store ----
        out_ref[...] = layer_norm(ffn + ln1, g2, b2)

    return kernel


def pack_params(params, *, d_attention, num_heads):
    """One-time parameter re-layout for the kernel (not a per-call transform)."""
    E = params["wf"].shape[0]
    H, D = num_heads, d_attention
    scaling = 1.0 / math.sqrt(D)
    wq_scaled = params["wq"] * scaling                               # fold 1/sqrt(D) into Q
    # Fold Wo into V: per head (E, D) @ (D, E) -> (E, E); concat over heads.
    wv, wo = params["wv"], params["wo"]
    wv_fused = jnp.concatenate(
        [wv[:, h * D:(h + 1) * D] @ wo[h * D:(h + 1) * D, :] for h in range(H)],
        axis=1)                                                      # (E, H*E)
    wqkv = jnp.concatenate([wq_scaled, params["wk"], wv_fused], axis=1)  # (E, 2HD + HE)
    return {
        "wqkv": wqkv,
        "wf": params["wf"],
        "bf": params["bf"].reshape(1, E),
        "g1": params["g1"], "b1": params["b1"],
        "g2": params["g2"], "b2": params["b2"],
    }


def _default_batch_blocks(batch):
    """1 grid step on single-TC v5e/v6e; 2 (one per TensorCore) on v7x."""
    try:
        kind = jax.devices()[0].device_kind.lower()
    except Exception:
        kind = ""
    want = 2 if ("v7" in kind or "7x" in kind) else 1
    while want > 1 and batch % want != 0:
        want -= 1
    return max(want, 1)


def encoder_layer_pallas(x, mask, packed, *, d_attention, num_heads,
                         batch_blocks=None):
    """x: (B, N, E) f32, mask: (B, N) f32 in {0,1} (same semantics as reference)."""
    B, N, E = x.shape
    if batch_blocks is None:
        batch_blocks = _default_batch_blocks(B)
    assert B % batch_blocks == 0, "batch must divide evenly into batch blocks"
    Bt = B // batch_blocks
    T = Bt * N
    assert T % 8 == 0, "tokens per block must be a multiple of 8 (sublane tiling)"

    kernel = _make_encoder_kernel(N, E, d_attention, num_heads, Bt)

    # Zero-cost layout plumbing outside the kernel (plain contiguous reshapes).
    x2d = x.reshape(B * N, E)                       # flat token slab
    mask_r = mask.reshape(batch_blocks, 1, T)       # lane-major mask view
    mask_c = mask.reshape(batch_blocks, T, 1)       # sublane-major mask view

    # Static (T, T) structures: depend only on (N, Bt), built once on host and
    # passed as replicated (constant index_map) inputs -> fetched once, never
    # recomputed inside the kernel.
    rows = np.arange(T)[:, None]
    cols = np.arange(T)[None, :]
    same_batch = (rows // N) == (cols // N)                         # block-diagonal
    valid_static = jnp.asarray((same_batch & (rows != cols)).astype(np.float32))
    same_f = jnp.asarray(same_batch.astype(np.float32))

    def rep(arr):
        nd = arr.ndim
        return pl.BlockSpec(arr.shape, lambda c, nd=nd: (0,) * nd)

    grid_spec = pltpu.PrefetchScalarGridSpec(
        num_scalar_prefetch=0,
        grid=(batch_blocks,),
        in_specs=[
            pl.BlockSpec((T, E), lambda c: (c, 0)),          # x (flat tokens)
            pl.BlockSpec((1, 1, T), lambda c: (c, 0, 0)),    # mask, lane layout
            pl.BlockSpec((1, T, 1), lambda c: (c, 0, 0)),    # mask, sublane layout
            rep(valid_static), rep(same_f),                  # static (T,T) structures
            rep(packed["wqkv"]),
            rep(packed["wf"]), rep(packed["bf"]),
            rep(packed["g1"]), rep(packed["b1"]),
            rep(packed["g2"]), rep(packed["b2"]),
        ],
        out_specs=pl.BlockSpec((T, E), lambda c: (c, 0)),
    )

    out2d = pl.pallas_call(
        kernel,
        out_shape=jax.ShapeDtypeStruct((B * N, E), jnp.float32),
        grid_spec=grid_spec,
        compiler_params=pltpu.CompilerParams(
            dimension_semantics=("parallel",),       # both v7x TensorCores take a block
            vmem_limit_bytes=32 * 1024 * 1024,       # explicit scoped-VMEM headroom
        ),
    )(x2d, mask_r, mask_c, valid_static, same_f,
      packed["wqkv"], packed["wf"], packed["bf"],
      packed["g1"], packed["b1"], packed["g2"], packed["b2"])

    return out2d.reshape(B, N, E)


def encoder_layer_ref(x, mask, params, *, d_attention, num_heads, eps=1e-5):
    """Pure-JAX reference matching the PyTorch forward."""
    B, N, E = x.shape
    scaling = 1.0 / math.sqrt(d_attention)
    neg_max = -jnp.finfo(jnp.float32).max

    mm = mask[:, :, None] * mask[:, None, :]                      # (B, N, N)
    eye = jnp.eye(N, dtype=bool)
    valid = (mm > 0.0) & (~eye)[None]

    q_all = jnp.einsum("bne,ed->bnd", x, params["wq"])
    k_all = jnp.einsum("bne,ed->bnd", x, params["wk"])
    v_all = jnp.einsum("bne,ed->bnd", x, params["wv"])

    heads = []
    for h in range(num_heads):
        s = h * d_attention
        q, k, v = (a[:, :, s:s + d_attention] for a in (q_all, k_all, v_all))
        dots = jnp.einsum("bid,bjd->bij", q, k) * scaling
        dots = jnp.where(valid, dots, neg_max)
        attn = jax.nn.softmax(dots, axis=-1)
        heads.append(jnp.einsum("bij,bjd->bid", attn, v))
    cat = jnp.concatenate(heads, axis=-1)
    attn_out = jnp.einsum("bnk,ke->bne", cat, params["wo"])

    def ln(y, g, b):
        mu = jnp.mean(y, axis=(1, 2), keepdims=True)
        var = jnp.mean((y - mu) ** 2, axis=(1, 2), keepdims=True)
        return (y - mu) * lax.rsqrt(var + eps) * g[None] + b[None]

    ln1 = ln(attn_out + x, params["g1"], params["b1"])
    ffn = jax.nn.relu(jnp.einsum("bne,ef->bnf", ln1, params["wf"])
                      + params["bf"][None, None])
    return ln(ffn + ln1, params["g2"], params["b2"])


if __name__ == "__main__":
    # Small, module-consistent shapes (B large enough to exercise batch blocking).
    B, N, E = 8, 8, 8              # batch, n_words, embed_dim
    D_ATT, HEADS = 8, 2            # d_attention, num_heads

    key = jax.random.PRNGKey(0)
    kp = jax.random.split(key, 12)

    params = {
        "wq": 0.1 * jax.random.normal(kp[0], (E, HEADS * D_ATT), jnp.float32),
        "wk": 0.1 * jax.random.normal(kp[1], (E, HEADS * D_ATT), jnp.float32),
        "wv": 0.1 * jax.random.normal(kp[2], (E, HEADS * D_ATT), jnp.float32),
        "wo": 0.1 * jax.random.normal(kp[3], (HEADS * D_ATT, E), jnp.float32),
        "wf": 0.1 * jax.random.normal(kp[4], (E, E), jnp.float32),
        "bf": 0.1 * jax.random.normal(kp[5], (E,), jnp.float32),
        "g1": 1.0 + 0.05 * jax.random.normal(kp[6], (N, E), jnp.float32),
        "b1": 0.05 * jax.random.normal(kp[7], (N, E), jnp.float32),
        "g2": 1.0 + 0.05 * jax.random.normal(kp[8], (N, E), jnp.float32),
        "b2": 0.05 * jax.random.normal(kp[9], (N, E), jnp.float32),
    }
    x = jax.random.normal(kp[10], (B, N, E), jnp.float32)
    mask = jax.random.bernoulli(kp[11], 0.8, (B, N)).astype(jnp.float32)

    packed = pack_params(params, d_attention=D_ATT, num_heads=HEADS)

    out = encoder_layer_pallas(x, mask, packed, d_attention=D_ATT, num_heads=HEADS)
    out = jax.block_until_ready(out)

    ref = encoder_layer_ref(x, mask, params, d_attention=D_ATT, num_heads=HEADS)
    ref = jax.block_until_ready(ref)

    assert out.shape == (B, N, E)
    err = jnp.max(jnp.abs(out - ref))
    assert jnp.allclose(out, ref, atol=1e-4, rtol=1e-4), f"max abs err = {err}"
    print("KERNEL_OK")
</pallas_src>

<mosaic_0001>
module attributes {stable_mosaic.version = 11 : i64} {
  func.func @kernel(%arg0: i32, %arg1: memref<64x8xf32, #tpu.memory_space<vmem>>, %arg2: memref<1x1x64xf32, #tpu.memory_space<vmem>>, %arg3: memref<1x64x1xf32, #tpu.memory_space<vmem>>, %arg4: memref<64x64xf32, #tpu.memory_space<vmem>>, %arg5: memref<64x64xf32, #tpu.memory_space<vmem>>, %arg6: memref<8x48xf32, #tpu.memory_space<vmem>>, %arg7: memref<8x8xf32, #tpu.memory_space<vmem>>, %arg8: memref<1x8xf32, #tpu.memory_space<vmem>>, %arg9: memref<8x8xf32, #tpu.memory_space<vmem>>, %arg10: memref<8x8xf32, #tpu.memory_space<vmem>>, %arg11: memref<8x8xf32, #tpu.memory_space<vmem>>, %arg12: memref<8x8xf32, #tpu.memory_space<vmem>>, %arg13: memref<64x8xf32, #tpu.memory_space<vmem>>) attributes {dimension_semantics = [#tpu.dimension_semantics<parallel>], iteration_bounds = array<i64: 1>, scalar_prefetch = 0 : i64, scratch_operands = 0 : i64, tpu.core_type = #tpu.core_type<tc>, window_params = [{transform_indices = @transform_0, window_bounds = array<i64: 64, 8>}, {transform_indices = @transform_1, window_bounds = array<i64: 1, 1, 64>}, {transform_indices = @transform_2, window_bounds = array<i64: 1, 64, 1>}, {pipeline_mode = #tpu.pipeline_mode<synchronous>, transform_indices = @transform_3, window_bounds = array<i64: 64, 64>}, {pipeline_mode = #tpu.pipeline_mode<synchronous>, transform_indices = @transform_4, window_bounds = array<i64: 64, 64>}, {pipeline_mode = #tpu.pipeline_mode<synchronous>, transform_indices = @transform_5, window_bounds = array<i64: 8, 48>}, {pipeline_mode = #tpu.pipeline_mode<synchronous>, transform_indices = @transform_6, window_bounds = array<i64: 8, 8>}, {pipeline_mode = #tpu.pipeline_mode<synchronous>, transform_indices = @transform_7, window_bounds = array<i64: 1, 8>}, {pipeline_mode = #tpu.pipeline_mode<synchronous>, transform_indices = @transform_8, window_bounds = array<i64: 8, 8>}, {pipeline_mode = #tpu.pipeline_mode<synchronous>, transform_indices = @transform_9, window_bounds = array<i64: 8, 8>}, {pipeline_mode = #tpu.pipeline_mode<synchronous>, transform_indices = @transform_10, window_bounds = array<i64: 8, 8>}, {pipeline_mode = #tpu.pipeline_mode<synchronous>, transform_indices = @transform_11, window_bounds = array<i64: 8, 8>}, {transform_indices = @transform_12, window_bounds = array<i64: 64, 8>}]} {
    %c0 = arith.constant 0 : index
    %c0_0 = arith.constant 0 : index
    %0 = vector.load %arg1[%c0, %c0_0] : memref<64x8xf32, #tpu.memory_space<vmem>>, vector<64x8xf32>
    %c0_1 = arith.constant 0 : index
    %c0_2 = arith.constant 0 : index
    %c0_3 = arith.constant 0 : index
    %1 = vector.load %arg2[%c0_1, %c0_2, %c0_3] : memref<1x1x64xf32, #tpu.memory_space<vmem>>, vector<1x1x64xf32>
    %2 = vector.shape_cast %1 : vector<1x1x64xf32> to vector<1x64xf32>
    %c0_4 = arith.constant 0 : index
    %c0_5 = arith.constant 0 : index
    %c0_6 = arith.constant 0 : index
    %3 = vector.load %arg3[%c0_4, %c0_5, %c0_6] : memref<1x64x1xf32, #tpu.memory_space<vmem>>, vector<1x64x1xf32>
    %4 = vector.shape_cast %3 : vector<1x64x1xf32> to vector<64x1xf32>
    %c0_7 = arith.constant 0 : index
    %c0_8 = arith.constant 0 : index
    %5 = vector.load %arg5[%c0_7, %c0_8] : memref<64x64xf32, #tpu.memory_space<vmem>>, vector<64x64xf32>
    %cst = arith.constant 1.562500e-02 : f32
    %6 = vector.broadcast %cst : f32 to vector<64x64xf32>
    %7 = arith.mulf %5, %6 : vector<64x64xf32>
    %c0_9 = arith.constant 0 : index
    %c0_10 = arith.constant 0 : index
    %8 = vector.load %arg4[%c0_9, %c0_10] : memref<64x64xf32, #tpu.memory_space<vmem>>, vector<64x64xf32>
    %9 = vector.broadcast %4 : vector<64x1xf32> to vector<64x64xf32>
    %10 = vector.broadcast %2 : vector<1x64xf32> to vector<64x64xf32>
    %11 = arith.mulf %9, %10 : vector<64x64xf32>
    %12 = arith.mulf %8, %11 : vector<64x64xf32>
    %cst_11 = arith.constant 0.000000e+00 : f32
    %13 = vector.broadcast %cst_11 : f32 to vector<64x64xf32>
    %14 = arith.cmpf ogt, %12, %13 : vector<64x64xf32>
    %c0_12 = arith.constant 0 : index
    %c0_13 = arith.constant 0 : index
    %15 = vector.load %arg6[%c0_12, %c0_13] : memref<8x48xf32, #tpu.memory_space<vmem>>, vector<8x48xf32>
    %cst_14 = arith.constant dense<0.000000e+00> : vector<64x48xf32>
    %16 = tpu.matmul %0, %15, %cst_14 {dimension_numbers = #tpu.dot_dimension_numbers<[1], [0], [0], [1], [0, 0, 1, 1], [], []>} : vector<64x8xf32>, vector<8x48xf32>, vector<64x48xf32> -> vector<64x48xf32>
    %17 = vector.extract_strided_slice %16 {offsets = [0, 0], sizes = [64, 8], strides = [1, 1]} : vector<64x48xf32> to vector<64x8xf32>
    %18 = vector.extract_strided_slice %16 {offsets = [0, 16], sizes = [64, 8], strides = [1, 1]} : vector<64x48xf32> to vector<64x8xf32>
    %19 = vector.extract_strided_slice %16 {offsets = [0, 32], sizes = [64, 8], strides = [1, 1]} : vector<64x48xf32> to vector<64x8xf32>
    %cst_15 = arith.constant dense<0.000000e+00> : vector<64x64xf32>
    %20 = tpu.matmul %17, %18, %cst_15 {dimension_numbers = #tpu.dot_dimension_numbers<[1], [1], [0], [0], [0, 0, 1, 0], [], []>} : vector<64x8xf32>, vector<64x8xf32>, vector<64x64xf32> -> vector<64x64xf32>
    %cst_16 = arith.constant -3.40282347E+38 : f32
    %21 = vector.broadcast %cst_16 : f32 to vector<64x64xf32>
    %22 = arith.select %14, %20, %21 : vector<64x64xi1>, vector<64x64xf32>
    %cst_17 = arith.constant dense<0xFF800000> : vector<64xf32>
    %23 = vector.multi_reduction <maximumf>, %22, %cst_17 [1] : vector<64x64xf32> to vector<64xf32>
    %24 = vector.shape_cast %23 : vector<64xf32> to vector<64x1xf32>
    %25 = vector.broadcast %24 : vector<64x1xf32> to vector<64x64xf32>
    %26 = arith.subf %22, %25 : vector<64x64xf32>
    %27 = math.exp %26 : vector<64x64xf32>
    %28 = arith.mulf %27, %5 : vector<64x64xf32>
    %cst_18 = arith.constant dense<0.000000e+00> : vector<64xf32>
    %29 = vector.multi_reduction <add>, %28, %cst_18 [1] : vector<64x64xf32> to vector<64xf32>
    %30 = vector.shape_cast %29 : vector<64xf32> to vector<64x1xf32>
    %31 = tpu.reciprocal %30 {approx = true} : vector<64x1xf32> -> vector<64x1xf32>
    %32 = arith.mulf %30, %31 : vector<64x1xf32>
    %cst_19 = arith.constant 2.000000e+00 : f32
    %33 = vector.broadcast %cst_19 : f32 to vector<64x1xf32>
    %34 = arith.subf %33, %32 : vector<64x1xf32>
    %35 = arith.mulf %31, %34 : vector<64x1xf32>
    %cst_20 = arith.constant dense<0.000000e+00> : vector<64x8xf32>
    %36 = tpu.matmul %28, %19, %cst_20 {dimension_numbers = #tpu.dot_dimension_numbers<[1], [0], [0], [1], [0, 0, 1, 1], [], []>} : vector<64x64xf32>, vector<64x8xf32>, vector<64x8xf32> -> vector<64x8xf32>
    %37 = vector.broadcast %35 : vector<64x1xf32> to vector<64x8xf32>
    %38 = arith.mulf %36, %37 : vector<64x8xf32>
    %39 = arith.addf %0, %38 : vector<64x8xf32>
    %40 = vector.extract_strided_slice %16 {offsets = [0, 8], sizes = [64, 8], strides = [1, 1]} : vector<64x48xf32> to vector<64x8xf32>
    %41 = vector.extract_strided_slice %16 {offsets = [0, 24], sizes = [64, 8], strides = [1, 1]} : vector<64x48xf32> to vector<64x8xf32>
    %42 = vector.extract_strided_slice %16 {offsets = [0, 40], sizes = [64, 8], strides = [1, 1]} : vector<64x48xf32> to vector<64x8xf32>
    %cst_21 = arith.constant dense<0.000000e+00> : vector<64x64xf32>
    %43 = tpu.matmul %40, %41, %cst_21 {dimension_numbers = #tpu.dot_dimension_numbers<[1], [1], [0], [0], [0, 0, 1, 0], [], []>} : vector<64x8xf32>, vector<64x8xf32>, vector<64x64xf32> -> vector<64x64xf32>
    %cst_22 = arith.constant -3.40282347E+38 : f32
    %44 = vector.broadcast %cst_22 : f32 to vector<64x64xf32>
    %45 = arith.select %14, %43, %44 : vector<64x64xi1>, vector<64x64xf32>
    %cst_23 = arith.constant dense<0xFF800000> : vector<64xf32>
    %46 = vector.multi_reduction <maximumf>, %45, %cst_23 [1] : vector<64x64xf32> to vector<64xf32>
    %47 = vector.shape_cast %46 : vector<64xf32> to vector<64x1xf32>
    %48 = vector.broadcast %47 : vector<64x1xf32> to vector<64x64xf32>
    %49 = arith.subf %45, %48 : vector<64x64xf32>
    %50 = math.exp %49 : vector<64x64xf32>
    %51 = arith.mulf %50, %5 : vector<64x64xf32>
    %cst_24 = arith.constant dense<0.000000e+00> : vector<64xf32>
    %52 = vector.multi_reduction <add>, %51, %cst_24 [1] : vector<64x64xf32> to vector<64xf32>
    %53 = vector.shape_cast %52 : vector<64xf32> to vector<64x1xf32>
    %54 = tpu.reciprocal %53 {approx = true} : vector<64x1xf32> -> vector<64x1xf32>
    %55 = arith.mulf %53, %54 : vector<64x1xf32>
    %cst_25 = arith.constant 2.000000e+00 : f32
    %56 = vector.broadcast %cst_25 : f32 to vector<64x1xf32>
    %57 = arith.subf %56, %55 : vector<64x1xf32>
    %58 = arith.mulf %54, %57 : vector<64x1xf32>
    %cst_26 = arith.constant dense<0.000000e+00> : vector<64x8xf32>
    %59 = tpu.matmul %51, %42, %cst_26 {dimension_numbers = #tpu.dot_dimension_numbers<[1], [0], [0], [1], [0, 0, 1, 1], [], []>} : vector<64x64xf32>, vector<64x8xf32>, vector<64x8xf32> -> vector<64x8xf32>
    %60 = vector.broadcast %58 : vector<64x1xf32> to vector<64x8xf32>
    %61 = arith.mulf %59, %60 : vector<64x8xf32>
    %62 = arith.addf %39, %61 : vector<64x8xf32>
    %c0_27 = arith.constant 0 : index
    %c0_28 = arith.constant 0 : index
    %63 = vector.load %arg9[%c0_27, %c0_28] : memref<8x8xf32, #tpu.memory_space<vmem>>, vector<8x8xf32>
    %64 = tpu.concatenate %63, %63, %63, %63, %63, %63, %63, %63 in 0 : vector<8x8xf32>, vector<8x8xf32>, vector<8x8xf32>, vector<8x8xf32>, vector<8x8xf32>, vector<8x8xf32>, vector<8x8xf32>, vector<8x8xf32> -> vector<64x8xf32>
    %c0_29 = arith.constant 0 : index
    %c0_30 = arith.constant 0 : index
    %65 = vector.load %arg10[%c0_29, %c0_30] : memref<8x8xf32, #tpu.memory_space<vmem>>, vector<8x8xf32>
    %66 = tpu.concatenate %65, %65, %65, %65, %65, %65, %65, %65 in 0 : vector<8x8xf32>, vector<8x8xf32>, vector<8x8xf32>, vector<8x8xf32>, vector<8x8xf32>, vector<8x8xf32>, vector<8x8xf32>, vector<8x8xf32> -> vector<64x8xf32>
    %c0_31 = arith.constant 0 : index
    %c0_32 = arith.constant 0 : index
    %67 = vector.load %arg11[%c0_31, %c0_32] : memref<8x8xf32, #tpu.memory_space<vmem>>, vector<8x8xf32>
    %68 = tpu.concatenate %67, %67, %67, %67, %67, %67, %67, %67 in 0 : vector<8x8xf32>, vector<8x8xf32>, vector<8x8xf32>, vector<8x8xf32>, vector<8x8xf32>, vector<8x8xf32>, vector<8x8xf32>, vector<8x8xf32> -> vector<64x8xf32>
    %c0_33 = arith.constant 0 : index
    %c0_34 = arith.constant 0 : index
    %69 = vector.load %arg12[%c0_33, %c0_34] : memref<8x8xf32, #tpu.memory_space<vmem>>, vector<8x8xf32>
    %70 = tpu.concatenate %69, %69, %69, %69, %69, %69, %69, %69 in 0 : vector<8x8xf32>, vector<8x8xf32>, vector<8x8xf32>, vector<8x8xf32>, vector<8x8xf32>, vector<8x8xf32>, vector<8x8xf32>, vector<8x8xf32> -> vector<64x8xf32>
    %71 = arith.mulf %62, %62 : vector<64x8xf32>
    %72 = tpu.concatenate %62, %71 in 1 : vector<64x8xf32>, vector<64x8xf32> -> vector<64x16xf32>
    %cst_35 = arith.constant dense<0.000000e+00> : vector<64x16xf32>
    %73 = tpu.matmul %7, %72, %cst_35 {dimension_numbers = #tpu.dot_dimension_numbers<[1], [0], [0], [1], [0, 0, 1, 1], [], []>} : vector<64x64xf32>, vector<64x16xf32>, vector<64x16xf32> -> vector<64x16xf32>
    %74 = vector.extract_strided_slice %73 {offsets = [0, 0], sizes = [64, 8], strides = [1, 1]} : vector<64x16xf32> to vector<64x8xf32>
    %cst_36 = arith.constant dense<0.000000e+00> : vector<64xf32>
    %75 = vector.multi_reduction <add>, %74, %cst_36 [1] : vector<64x8xf32> to vector<64xf32>
    %76 = vector.shape_cast %75 : vector<64xf32> to vector<64x1xf32>
    %77 = vector.extract_strided_slice %73 {offsets = [0, 8], sizes = [64, 8], strides = [1, 1]} : vector<64x16xf32> to vector<64x8xf32>
    %cst_37 = arith.constant dense<0.000000e+00> : vector<64xf32>
    %78 = vector.multi_reduction <add>, %77, %cst_37 [1] : vector<64x8xf32> to vector<64xf32>
    %79 = vector.shape_cast %78 : vector<64xf32> to vector<64x1xf32>
    %80 = arith.mulf %76, %76 : vector<64x1xf32>
    %81 = arith.subf %79, %80 : vector<64x1xf32>
    %cst_38 = arith.constant 9.99999974E-6 : f32
    %82 = vector.broadcast %cst_38 : f32 to vector<64x1xf32>
    %83 = arith.addf %81, %82 : vector<64x1xf32>
    %84 = math.rsqrt %83 : vector<64x1xf32>
    %85 = vector.broadcast %76 : vector<64x1xf32> to vector<64x8xf32>
    %86 = arith.subf %62, %85 : vector<64x8xf32>
    %87 = vector.broadcast %84 : vector<64x1xf32> to vector<64x8xf32>
    %88 = arith.mulf %86, %87 : vector<64x8xf32>
    %89 = arith.mulf %88, %64 : vector<64x8xf32>
    %90 = arith.addf %89, %66 : vector<64x8xf32>
    %c0_39 = arith.constant 0 : index
    %c0_40 = arith.constant 0 : index
    %91 = vector.load %arg7[%c0_39, %c0_40] : memref<8x8xf32, #tpu.memory_space<vmem>>, vector<8x8xf32>
    %cst_41 = arith.constant dense<0.000000e+00> : vector<64x8xf32>
    %92 = tpu.matmul %90, %91, %cst_41 {dimension_numbers = #tpu.dot_dimension_numbers<[1], [0], [0], [1], [0, 0, 1, 1], [], []>} : vector<64x8xf32>, vector<8x8xf32>, vector<64x8xf32> -> vector<64x8xf32>
    %c0_42 = arith.constant 0 : index
    %c0_43 = arith.constant 0 : index
    %93 = vector.load %arg8[%c0_42, %c0_43] : memref<1x8xf32, #tpu.memory_space<vmem>>, vector<1x8xf32>
    %94 = vector.broadcast %93 : vector<1x8xf32> to vector<64x8xf32>
    %95 = arith.addf %92, %94 : vector<64x8xf32>
    %cst_44 = arith.constant 0.000000e+00 : f32
    %96 = vector.broadcast %cst_44 : f32 to vector<64x8xf32>
    %97 = arith.maximumf %95, %96 : vector<64x8xf32>
    %98 = arith.addf %97, %90 : vector<64x8xf32>
    %99 = arith.mulf %98, %98 : vector<64x8xf32>
    %100 = tpu.concatenate %98, %99 in 1 : vector<64x8xf32>, vector<64x8xf32> -> vector<64x16xf32>
    %cst_45 = arith.constant dense<0.000000e+00> : vector<64x16xf32>
    %101 = tpu.matmul %7, %100, %cst_45 {dimension_numbers = #tpu.dot_dimension_numbers<[1], [0], [0], [1], [0, 0, 1, 1], [], []>} : vector<64x64xf32>, vector<64x16xf32>, vector<64x16xf32> -> vector<64x16xf32>
    %102 = vector.extract_strided_slice %101 {offsets = [0, 0], sizes = [64, 8], strides = [1, 1]} : vector<64x16xf32> to vector<64x8xf32>
    %cst_46 = arith.constant dense<0.000000e+00> : vector<64xf32>
    %103 = vector.multi_reduction <add>, %102, %cst_46 [1] : vector<64x8xf32> to vector<64xf32>
    %104 = vector.shape_cast %103 : vector<64xf32> to vector<64x1xf32>
    %105 = vector.extract_strided_slice %101 {offsets = [0, 8], sizes = [64, 8], strides = [1, 1]} : vector<64x16xf32> to vector<64x8xf32>
    %cst_47 = arith.constant dense<0.000000e+00> : vector<64xf32>
    %106 = vector.multi_reduction <add>, %105, %cst_47 [1] : vector<64x8xf32> to vector<64xf32>
    %107 = vector.shape_cast %106 : vector<64xf32> to vector<64x1xf32>
    %108 = arith.mulf %104, %104 : vector<64x1xf32>
    %109 = arith.subf %107, %108 : vector<64x1xf32>
    %cst_48 = arith.constant 9.99999974E-6 : f32
    %110 = vector.broadcast %cst_48 : f32 to vector<64x1xf32>
    %111 = arith.addf %109, %110 : vector<64x1xf32>
    %112 = math.rsqrt %111 : vector<64x1xf32>
    %113 = vector.broadcast %104 : vector<64x1xf32> to vector<64x8xf32>
    %114 = arith.subf %98, %113 : vector<64x8xf32>
    %115 = vector.broadcast %112 : vector<64x1xf32> to vector<64x8xf32>
    %116 = arith.mulf %114, %115 : vector<64x8xf32>
    %117 = arith.mulf %116, %68 : vector<64x8xf32>
    %118 = arith.addf %117, %70 : vector<64x8xf32>
    %c0_49 = arith.constant 0 : index
    %c0_50 = arith.constant 0 : index
    %119 = vector.load %arg13[%c0_49, %c0_50] : memref<64x8xf32, #tpu.memory_space<vmem>>, vector<64x8xf32>
    tpu.vector_store %arg13[%c0_49, %c0_50], %118 {strides = array<i32>} : memref<64x8xf32, #tpu.memory_space<vmem>>, vector<64x8xf32>,
    return
  }
  func.func @transform_0(%arg0: i32) -> (i32, i32) {
    %c0_i32 = arith.constant 0 : i32
    %c0_i32_0 = arith.constant 0 : i32
    return %arg0, %c0_i32 : i32, i32
  }
  func.func @transform_1(%arg0: i32) -> (i32, i32, i32) {
    %c0_i32 = arith.constant 0 : i32
    %c0_i32_0 = arith.constant 0 : i32
    %c0_i32_1 = arith.constant 0 : i32
    return %arg0, %c0_i32, %c0_i32_0 : i32, i32, i32
  }
  func.func @transform_2(%arg0: i32) -> (i32, i32, i32) {
    %c0_i32 = arith.constant 0 : i32
    %c0_i32_0 = arith.constant 0 : i32
    %c0_i32_1 = arith.constant 0 : i32
    return %arg0, %c0_i32, %c0_i32_0 : i32, i32, i32
  }
  func.func @transform_3(%arg0: i32) -> (i32, i32) {
    %c0_i32 = arith.constant 0 : i32
    %c0_i32_0 = arith.constant 0 : i32
    %c0_i32_1 = arith.constant 0 : i32
    return %c0_i32, %c0_i32_0 : i32, i32
  }
  func.func @transform_4(%arg0: i32) -> (i32, i32) {
    %c0_i32 = arith.constant 0 : i32
    %c0_i32_0 = arith.constant 0 : i32
    %c0_i32_1 = arith.constant 0 : i32
    return %c0_i32, %c0_i32_0 : i32, i32
  }
  func.func @transform_5(%arg0: i32) -> (i32, i32) {
    %c0_i32 = arith.constant 0 : i32
    %c0_i32_0 = arith.constant 0 : i32
    %c0_i32_1 = arith.constant 0 : i32
    return %c0_i32, %c0_i32_0 : i32, i32
  }
  func.func @transform_6(%arg0: i32) -> (i32, i32) {
    %c0_i32 = arith.constant 0 : i32
    %c0_i32_0 = arith.constant 0 : i32
    %c0_i32_1 = arith.constant 0 : i32
    return %c0_i32, %c0_i32_0 : i32, i32
  }
  func.func @transform_7(%arg0: i32) -> (i32, i32) {
    %c0_i32 = arith.constant 0 : i32
    %c0_i32_0 = arith.constant 0 : i32
    %c0_i32_1 = arith.constant 0 : i32
    return %c0_i32, %c0_i32_0 : i32, i32
  }
  func.func @transform_8(%arg0: i32) -> (i32, i32) {
    %c0_i32 = arith.constant 0 : i32
    %c0_i32_0 = arith.constant 0 : i32
    %c0_i32_1 = arith.constant 0 : i32
    return %c0_i32, %c0_i32_0 : i32, i32
  }
  func.func @transform_9(%arg0: i32) -> (i32, i32) {
    %c0_i32 = arith.constant 0 : i32
    %c0_i32_0 = arith.constant 0 : i32
    %c0_i32_1 = arith.constant 0 : i32
    return %c0_i32, %c0_i32_0 : i32, i32
  }
  func.func @transform_10(%arg0: i32) -> (i32, i32) {
    %c0_i32 = arith.constant 0 : i32
    %c0_i32_0 = arith.constant 0 : i32
    %c0_i32_1 = arith.constant 0 : i32
    return %c0_i32, %c0_i32_0 : i32, i32
  }
  func.func @transform_11(%arg0: i32) -> (i32, i32) {
    %c0_i32 = arith.constant 0 : i32
    %c0_i32_0 = arith.constant 0 : i32
    %c0_i32_1 = arith.constant 0 : i32
    return %c0_i32, %c0_i32_0 : i32, i32
  }
  func.func @transform_12(%arg0: i32) -> (i32, i32) {
    %c0_i32 = arith.constant 0 : i32
    %c0_i32_0 = arith.constant 0 : i32
    return %arg0, %c0_i32 : i32, i32
  }
}

</mosaic_0001>

<llo_original>
// kernel: tpu_custom_call.1
$region0: #{tpu_custom_call.1}
  #allocation0 [shape = 'u32[]', space=smem, size = 0x4, offset = 0x4, fixed_abs, tag = 'smem constant byte address 0x4 - core index']
  #allocation1 [shape = 'u32[72,128]{1,0:T(1,128)}', space=vmem, size = 0x9000, scoped, tag = 'internal scratch']
  %s0 = inlined_call_operand.vmem [shape: f32[64,8], index: 0, kind: input, shape index: {}]
  %s1 = inlined_call_operand.hbm [shape: f32[1,1,64], index: 1, kind: input, shape index: {}]
  %s2 = inlined_call_operand.vmem [shape: f32[1,64,1], index: 2, kind: input, shape index: {}]
  %s3 = inlined_call_operand.vmem [shape: f32[64,64], index: 3, kind: input, shape index: {}]
  %s4 = inlined_call_operand.vmem [shape: f32[64,64], index: 4, kind: input, shape index: {}]
  %s5 = inlined_call_operand.vmem [shape: f32[8,48], index: 5, kind: input, shape index: {}]
  %s6 = inlined_call_operand.hbm [shape: f32[8,8], index: 6, kind: input, shape index: {}]
  %s7 = inlined_call_operand.vmem [shape: f32[1,8], index: 7, kind: input, shape index: {}]
  %s8 = inlined_call_operand.hbm [shape: f32[8,8], index: 8, kind: input, shape index: {}]
  %s9 = inlined_call_operand.hbm [shape: f32[8,8], index: 9, kind: input, shape index: {}]
  %s10 = inlined_call_operand.vmem [shape: f32[8,8], index: 10, kind: input, shape index: {}]
  %s11 = inlined_call_operand.hbm [shape: f32[8,8], index: 11, kind: input, shape index: {}]
  %s12 = inlined_call_operand.vmem [shape: f32[64,8], index: 12, kind: output, shape index: {}]
  %s13 = sld [smem:[#allocation0]]
  $region78: #{tpu_custom_call.1} parent=0
    _
  %s15 = ssub.s32 1, %s13
  %s16 = scalar_select 0, %s15, %s13
  $region1: #{tpu_custom_call.1} parent=0
    #allocation2 [shape = 'u8[512]{0}', space=vmem, size = 0x400, scoped, tag = 'input window, operand 1, single buffered']
    #allocation3 [shape = 's32[1]{0}', space=sflag, size = 0x4, scoped, tag = 'scoped memory for tpu_custom_call.1']
    #allocation4 [shape = 'u8[4096]{0}', space=vmem, size = 0x1000, scoped, tag = 'input window, operand 6, single buffered']
    #allocation5 [shape = 's32[1]{0}', space=sflag, size = 0x4, scoped, tag = 'scoped memory for tpu_custom_call.1']
    #allocation6 [shape = 'u8[4096]{0}', space=vmem, size = 0x1000, scoped, tag = 'input window, operand 8, single buffered']
    #allocation7 [shape = 'u8[4096]{0}', space=vmem, size = 0x1000, scoped, tag = 'input window, operand 9, single buffered']
    #allocation8 [shape = 's32[1]{0}', space=sflag, size = 0x4, scoped, tag = 'scoped memory for tpu_custom_call.1']
    #allocation9 [shape = 'u8[4096]{0}', space=vmem, size = 0x1000, scoped, tag = 'input window, operand 11, single buffered']
    %17 = vsyncpa [#allocation3], 0
    %18 = vsyncpa [#allocation5], 0
    %19 = vsyncpa [#allocation8], 0
    // Predicated region
    $region2: #{tpu_custom_call.1} parent=1 // pred_check
      _
    $region3: #{tpu_custom_call.1} parent=1 // pred_check_branch
      %21 = sbr.rel (0) target = $region5
    $region4: #{tpu_custom_call.1} parent=1 // pred_region
      _
    $region5: #{tpu_custom_call.1} parent=1 // pred_fallthru
      _
    // Predicated region
    $region6: #{tpu_custom_call.1} parent=1 // pred_check
      _
    $region7: #{tpu_custom_call.1} parent=1 // pred_check_branch
      %23 = sbr.rel (0) target = $region9
    $region8: #{tpu_custom_call.1} parent=1 // pred_region
      %25 = vsyncadd [#allocation3], 0
      %s27 = sshll.u32 %s1, 4
      %s28 = int_to_ptr.hbm [resolvable:$true] %s27
      %s29 = sshll.u32 [#allocation2], 4
      %s30 = int_to_ptr.vmem [resolvable:$true] %s29
      %32 = dma.hbm_to_vmem [thread:$0]  %s28, 16, %s30, [#allocation3]
    $region9: #{tpu_custom_call.1} parent=1 // pred_fallthru
      _
    // Predicated region
    $region10: #{tpu_custom_call.1} parent=1 // pred_check
      _
    $region11: #{tpu_custom_call.1} parent=1 // pred_check_branch
      %34 = sbr.rel (0) target = $region13
    $region12: #{tpu_custom_call.1} parent=1 // pred_region
      _
    $region13: #{tpu_custom_call.1} parent=1 // pred_fallthru
      _
    // Predicated region
    $region14: #{tpu_custom_call.1} parent=1 // pred_check
      _
    $region15: #{tpu_custom_call.1} parent=1 // pred_check_branch
      %36 = sbr.rel (0) target = $region17
    $region16: #{tpu_custom_call.1} parent=1 // pred_region
      _
    $region17: #{tpu_custom_call.1} parent=1 // pred_fallthru
      _
    // Predicated region
    $region18: #{tpu_custom_call.1} parent=1 // pred_check
      _
    $region19: #{tpu_custom_call.1} parent=1 // pred_check_branch
      %38 = sbr.rel (0) target = $region21
    $region20: #{tpu_custom_call.1} parent=1 // pred_region
      _
    $region21: #{tpu_custom_call.1} parent=1 // pred_fallthru
      _
    // Predicated region
    $region22: #{tpu_custom_call.1} parent=1 // pred_check
      _
    $region23: #{tpu_custom_call.1} parent=1 // pred_check_branch
      %40 = sbr.rel (0) target = $region25
    $region24: #{tpu_custom_call.1} parent=1 // pred_region
      _
    $region25: #{tpu_custom_call.1} parent=1 // pred_fallthru
      _
    // Predicated region
    $region26: #{tpu_custom_call.1} parent=1 // pred_check
      _
    $region27: #{tpu_custom_call.1} parent=1 // pred_check_branch
      %42 = sbr.rel (0) target = $region29
    $region28: #{tpu_custom_call.1} parent=1 // pred_region
      %44 = vsyncadd [#allocation5], 0
      %s46 = sshll.u32 %s6, 4
      %s47 = int_to_ptr.hbm [resolvable:$true] %s46
      %s48 = sshll.u32 [#allocation4], 4
      %s49 = int_to_ptr.vmem [resolvable:$true] %s48
      %51 = dma.hbm_to_vmem [thread:$0]  %s47, 128, %s49, [#allocation5]
    $region29: #{tpu_custom_call.1} parent=1 // pred_fallthru
      _
    // Predicated region
    $region30: #{tpu_custom_call.1} parent=1 // pred_check
      _
    $region31: #{tpu_custom_call.1} parent=1 // pred_check_branch
      %53 = sbr.rel (0) target = $region33
    $region32: #{tpu_custom_call.1} parent=1 // pred_region
      _
    $region33: #{tpu_custom_call.1} parent=1 // pred_fallthru
      _
    // Predicated region
    $region34: #{tpu_custom_call.1} parent=1 // pred_check
      _
    $region35: #{tpu_custom_call.1} parent=1 // pred_check_branch
      %55 = sbr.rel (0) target = $region37
    $region36: #{tpu_custom_call.1} parent=1 // pred_region
      %57 = vsyncadd [#allocation5], 0
      %s59 = sshll.u32 %s8, 4
      %s60 = int_to_ptr.hbm [resolvable:$true] %s59
      %s61 = sshll.u32 [#allocation6], 4
      %s62 = int_to_ptr.vmem [resolvable:$true] %s61
      %64 = dma.hbm_to_vmem [thread:$0]  %s60, 128, %s62, [#allocation5]
    $region37: #{tpu_custom_call.1} parent=1 // pred_fallthru
      _
    // Predicated region
    $region38: #{tpu_custom_call.1} parent=1 // pred_check
      _
    $region39: #{tpu_custom_call.1} parent=1 // pred_check_branch
      %66 = sbr.rel (0) target = $region41
    $region40: #{tpu_custom_call.1} parent=1 // pred_region
      %68 = vsyncadd [#allocation8], 0
      %s70 = sshll.u32 %s9, 4
      %s71 = int_to_ptr.hbm [resolvable:$true] %s70
      %s72 = sshll.u32 [#allocation7], 4
      %s73 = int_to_ptr.vmem [resolvable:$true] %s72
      %75 = dma.hbm_to_vmem [thread:$0]  %s71, 128, %s73, [#allocation8]
    $region41: #{tpu_custom_call.1} parent=1 // pred_fallthru
      _
    // Predicated region
    $region42: #{tpu_custom_call.1} parent=1 // pred_check
      _
    $region43: #{tpu_custom_call.1} parent=1 // pred_check_branch
      %77 = sbr.rel (0) target = $region45
    $region44: #{tpu_custom_call.1} parent=1 // pred_region
      _
    $region45: #{tpu_custom_call.1} parent=1 // pred_fallthru
      _
    // Predicated region
    $region46: #{tpu_custom_call.1} parent=1 // pred_check
      _
    $region47: #{tpu_custom_call.1} parent=1 // pred_check_branch
      %79 = sbr.rel (0) target = $region49
    $region48: #{tpu_custom_call.1} parent=1 // pred_region
      %81 = vsyncadd [#allocation8], 0
      %s83 = sshll.u32 %s11, 4
      %s84 = int_to_ptr.hbm [resolvable:$true] %s83
      %s85 = sshll.u32 [#allocation9], 4
      %s86 = int_to_ptr.vmem [resolvable:$true] %s85
      %88 = dma.hbm_to_vmem [thread:$0]  %s84, 128, %s86, [#allocation8]
    $region49: #{tpu_custom_call.1} parent=1 // pred_fallthru
      _
    // Predicated region
    $region50: #{tpu_custom_call.1} parent=1 // pred_check
      _
    $region51: #{tpu_custom_call.1} parent=1 // pred_check_branch
      %90 = sbr.rel (0) target = $region53
    $region52: #{tpu_custom_call.1} parent=1 // pred_region
      %92 = dma.done [#allocation3], 16
    $region53: #{tpu_custom_call.1} parent=1 // pred_fallthru
      _
    // Predicated region
    $region54: #{tpu_custom_call.1} parent=1 // pred_check
      _
    $region55: #{tpu_custom_call.1} parent=1 // pred_check_branch
      %94 = sbr.rel (0) target = $region57
    $region56: #{tpu_custom_call.1} parent=1 // pred_region
      %96 = dma.done [#allocation5], 128
    $region57: #{tpu_custom_call.1} parent=1 // pred_fallthru
      _
    // Predicated region
    $region58: #{tpu_custom_call.1} parent=1 // pred_check
      _
    $region59: #{tpu_custom_call.1} parent=1 // pred_check_branch
      %98 = sbr.rel (0) target = $region61
    $region60: #{tpu_custom_call.1} parent=1 // pred_region
      %100 = dma.done [#allocation5], 128
    $region61: #{tpu_custom_call.1} parent=1 // pred_fallthru
      _
    // Predicated region
    $region62: #{tpu_custom_call.1} parent=1 // pred_check
      _
    $region63: #{tpu_custom_call.1} parent=1 // pred_check_branch
      %102 = sbr.rel (0) target = $region65
    $region64: #{tpu_custom_call.1} parent=1 // pred_region
      %104 = dma.done [#allocation8], 128
    $region65: #{tpu_custom_call.1} parent=1 // pred_fallthru
      _
    // Predicated region
    $region66: #{tpu_custom_call.1} parent=1 // pred_check
      _
    $region67: #{tpu_custom_call.1} parent=1 // pred_check_branch
      %106 = sbr.rel (0) target = $region69
    $region68: #{tpu_custom_call.1} parent=1 // pred_region
      %108 = dma.done [#allocation8], 128
    $region69: #{tpu_custom_call.1} parent=1 // pred_fallthru
      _
    %v109 = vld [vmem:[%s0] sm:$0xff]
    %v110 = vld [vmem:[%s0 + $0x8] sm:$0xff]
    %v111 = vld [vmem:[%s0 + $0x10] sm:$0xff]
    %v112 = vld [vmem:[%s0 + $0x18] sm:$0xff]
    %v113 = vld [vmem:[%s0 + $0x20] sm:$0xff]
    %v114 = vld [vmem:[%s0 + $0x28] sm:$0xff]
    %v115 = vld [vmem:[%s0 + $0x30] sm:$0xff]
    %v116 = vld [vmem:[%s0 + $0x38] sm:$0xff]
    %v117 = vld [vmem:[#allocation2] sm:$0x1]
    %v118 = vld [vmem:[%s2] sm:$0xff]
    %v119 = vld [vmem:[%s2 + $0x8] sm:$0xff]
    %v120 = vld [vmem:[%s2 + $0x10] sm:$0xff]
    %v121 = vld [vmem:[%s2 + $0x18] sm:$0xff]
    %v122 = vld [vmem:[%s2 + $0x20] sm:$0xff]
    %v123 = vld [vmem:[%s2 + $0x28] sm:$0xff]
    %v124 = vld [vmem:[%s2 + $0x30] sm:$0xff]
    %v125 = vld [vmem:[%s2 + $0x38] sm:$0xff]
    %v126 = vld [vmem:[%s4] sm:$0xff]
    %v127 = vld [vmem:[%s4 + $0x8] sm:$0xff]
    %v128 = vld [vmem:[%s4 + $0x10] sm:$0xff]
    %v129 = vld [vmem:[%s4 + $0x18] sm:$0xff]
    %v130 = vld [vmem:[%s4 + $0x20] sm:$0xff]
    %v131 = vld [vmem:[%s4 + $0x28] sm:$0xff]
    %v132 = vld [vmem:[%s4 + $0x30] sm:$0xff]
    %v133 = vld [vmem:[%s4 + $0x38] sm:$0xff]
    %v134 = vmul.f32 %v126, 0.015625
    %v135 = vmul.f32 %v127, 0.015625
    %v136 = vmul.f32 %v128, 0.015625
    %v137 = vmul.f32 %v129, 0.015625
    %v138 = vmul.f32 %v130, 0.015625
    %v139 = vmul.f32 %v131, 0.015625
    %v140 = vmul.f32 %v132, 0.015625
    %v141 = vmul.f32 %v133, 0.015625
    %v142 = vld [vmem:[%s3] sm:$0xff]
    %v143 = vld [vmem:[%s3 + $0x8] sm:$0xff]
    %v144 = vld [vmem:[%s3 + $0x10] sm:$0xff]
    %v145 = vld [vmem:[%s3 + $0x18] sm:$0xff]
    %v146 = vld [vmem:[%s3 + $0x20] sm:$0xff]
    %v147 = vld [vmem:[%s3 + $0x28] sm:$0xff]
    %v148 = vld [vmem:[%s3 + $0x30] sm:$0xff]
    %v149 = vld [vmem:[%s3 + $0x38] sm:$0xff]
    %151 = vset.pattern.permute.xlu0 0
    %152 = vperm.xlu0 %151, %v118
    %v153 = vpop.permute.xlu0 %152
    %156 = vset.pattern.permute.xlu0 0
    %157 = vperm.xlu0 %156, %v119
    %v158 = vpop.permute.xlu0 %157
    %161 = vset.pattern.permute.xlu0 0
    %162 = vperm.xlu0 %161, %v120
    %v163 = vpop.permute.xlu0 %162
    %166 = vset.pattern.permute.xlu0 0
    %167 = vperm.xlu0 %166, %v121
    %v168 = vpop.permute.xlu0 %167
    %171 = vset.pattern.permute.xlu0 0
    %172 = vperm.xlu0 %171, %v122
    %v173 = vpop.permute.xlu0 %172
    %176 = vset.pattern.permute.xlu0 0
    %177 = vperm.xlu0 %176, %v123
    %v178 = vpop.permute.xlu0 %177
    %181 = vset.pattern.permute.xlu0 0
    %182 = vperm.xlu0 %181, %v124
    %v183 = vpop.permute.xlu0 %182
    %186 = vset.pattern.permute.xlu0 0
    %187 = vperm.xlu0 %186, %v125
    %v188 = vpop.permute.xlu0 %187
    %v191 = vperm.slane %v117, 0
    %v193 = vmul.f32 %v153, %v191
    %v194 = vmul.f32 %v158, %v191
    %v195 = vmul.f32 %v163, %v191
    %v196 = vmul.f32 %v168, %v191
    %v197 = vmul.f32 %v173, %v191
    %v198 = vmul.f32 %v178, %v191
    %v199 = vmul.f32 %v183, %v191
    %v200 = vmul.f32 %v188, %v191
    %v201 = vmul.f32 %v142, %v193
    %v202 = vmul.f32 %v143, %v194
    %v203 = vmul.f32 %v144, %v195
    %v204 = vmul.f32 %v145, %v196
    %v205 = vmul.f32 %v146, %v197
    %v206 = vmul.f32 %v147, %v198
    %v207 = vmul.f32 %v148, %v199
    %v208 = vmul.f32 %v149, %v200
    %vm209 = vcmp.gt.f32.partialorder %v201, 0.0
    %vm210 = vcmp.gt.f32.partialorder %v202, 0.0
    %vm211 = vcmp.gt.f32.partialorder %v203, 0.0
    %vm212 = vcmp.gt.f32.partialorder %v204, 0.0
    %vm213 = vcmp.gt.f32.partialorder %v205, 0.0
    %vm214 = vcmp.gt.f32.partialorder %v206, 0.0
    %vm215 = vcmp.gt.f32.partialorder %v207, 0.0
    %vm216 = vcmp.gt.f32.partialorder %v208, 0.0
    %v217 = vld [vmem:[%s5] sm:$0xff]
    %vm218 = vcmask 64512
    %v220 = vsel %vm218, %v109, 0
    %v223 = vsel %vm218, %v110, 0
    %v226 = vsel %vm218, %v111, 0
    %v229 = vsel %vm218, %v112, 0
    %v232 = vsel %vm218, %v113, 0
    %v235 = vsel %vm218, %v114, 0
    %v238 = vsel %vm218, %v115, 0
    %v241 = vsel %vm218, %v116, 0
    %243 = vmatpush.msra.mxu0 0.0
    %244 = vmatpush.msra.mxu0 0.0
    %245 = vmatpush.msra.mxu0 0.0
    %246 = vmatpush.msra.mxu0 0.0
    %247 = vmatpush.msra.mxu0 0.0
    %248 = vmatpush.msra.mxu0 0.0
    %249 = vmatpush.msra.mxu0 0.0
    %250 = vmatpush.msra.mxu0 0.0
    %251 = vmatpush.msra.mxu0 0.0
    %252 = vmatpush.msra.mxu0 0.0
    %253 = vmatpush.msra.mxu0 0.0
    %254 = vmatpush.msra.mxu0 0.0
    %255 = vmatpush.msra.mxu0 0.0
    %256 = vmatpush.msra.mxu0 0.0
    %257 = vmatpush.msra.mxu0 0.0
    %258 = vmatpush.msra.mxu0 %v217
    %259 = vmatmul.f32.gmra.mxu0 %v220
    %v260 = vpop.f32.mrf.mxu0
    %v261 = vadd.f32 0.0, %v260
    %262 = vmatmul.f32.gmra.mxu0 %v223
    %v263 = vpop.f32.mrf.mxu0
    %v264 = vadd.f32 0.0, %v263
    %265 = vmatmul.f32.gmra.mxu0 %v226
    %v266 = vpop.f32.mrf.mxu0
    %v267 = vadd.f32 0.0, %v266
    %268 = vmatmul.f32.gmra.mxu0 %v229
    %v269 = vpop.f32.mrf.mxu0
    %v270 = vadd.f32 0.0, %v269
    %271 = vmatmul.f32.gmra.mxu0 %v232
    %v272 = vpop.f32.mrf.mxu0
    %v273 = vadd.f32 0.0, %v272
    %274 = vmatmul.f32.gmra.mxu0 %v235
    %v275 = vpop.f32.mrf.mxu0
    %v276 = vadd.f32 0.0, %v275
    %277 = vmatmul.f32.gmra.mxu0 %v238
    %v278 = vpop.f32.mrf.mxu0
    %v279 = vadd.f32 0.0, %v278
    %280 = vmatmul.f32.gmra.mxu0 %v241
    %v281 = vpop.f32.mrf.mxu0
    %v282 = vadd.f32 0.0, %v281
    %283 = vdwg.mxu0
    %292 = vrot.lane.b32.xlu0 %v261, 112
    %v293 = vpop.permute.xlu0 %292
    %294 = vrot.lane.b32.xlu0 %v264, 112
    %v295 = vpop.permute.xlu0 %294
    %296 = vrot.lane.b32.xlu0 %v267, 112
    %v297 = vpop.permute.xlu0 %296
    %298 = vrot.lane.b32.xlu0 %v270, 112
    %v299 = vpop.permute.xlu0 %298
    %300 = vrot.lane.b32.xlu0 %v273, 112
    %v301 = vpop.permute.xlu0 %300
    %302 = vrot.lane.b32.xlu0 %v276, 112
    %v303 = vpop.permute.xlu0 %302
    %304 = vrot.lane.b32.xlu0 %v279, 112
    %v305 = vpop.permute.xlu0 %304
    %306 = vrot.lane.b32.xlu0 %v282, 112
    %v307 = vpop.permute.xlu0 %306
    %v308 = vsel %vm218, %v261, 0
    %v310 = vsel %vm218, %v264, 0
    %v312 = vsel %vm218, %v267, 0
    %v314 = vsel %vm218, %v270, 0
    %v316 = vsel %vm218, %v273, 0
    %v318 = vsel %vm218, %v276, 0
    %v320 = vsel %vm218, %v279, 0
    %v322 = vsel %vm218, %v282, 0
    %v324 = vsel %vm218, %v293, 0
    %v326 = vsel %vm218, %v295, 0
    %v328 = vsel %vm218, %v297, 0
    %v330 = vsel %vm218, %v299, 0
    %v332 = vsel %vm218, %v301, 0
    %v334 = vsel %vm218, %v303, 0
    %v336 = vsel %vm218, %v305, 0
    %v338 = vsel %vm218, %v307, 0
    %340 = vmatpush.xpose.msra.mxu0 0.0
    %341 = vmatpush.xpose.msra.mxu0 0.0
    %342 = vmatpush.xpose.msra.mxu0 0.0
    %343 = vmatpush.xpose.msra.mxu0 0.0
    %344 = vmatpush.xpose.msra.mxu0 0.0
    %345 = vmatpush.xpose.msra.mxu0 0.0
    %346 = vmatpush.xpose.msra.mxu0 0.0
    %347 = vmatpush.xpose.msra.mxu0 0.0
    %348 = vmatpush.xpose.msra.mxu0 %v338
    %349 = vmatpush.xpose.msra.mxu0 %v336
    %350 = vmatpush.xpose.msra.mxu0 %v334
    %351 = vmatpush.xpose.msra.mxu0 %v332
    %352 = vmatpush.xpose.msra.mxu0 %v330
    %353 = vmatpush.xpose.msra.mxu0 %v328
    %354 = vmatpush.xpose.msra.mxu0 %v326
    %355 = vmatpush.xpose.msra.mxu0 %v324
    %356 = vmatmul.f32.gmra.mxu0 %v308
    %v357 = vpop.f32.mrf.mxu0
    %v358 = vadd.f32 0.0, %v357
    %359 = vmatmul.f32.gmra.mxu0 %v310
    %v360 = vpop.f32.mrf.mxu0
    %v361 = vadd.f32 0.0, %v360
    %362 = vmatmul.f32.gmra.mxu0 %v312
    %v363 = vpop.f32.mrf.mxu0
    %v364 = vadd.f32 0.0, %v363
    %365 = vmatmul.f32.gmra.mxu0 %v314
    %v366 = vpop.f32.mrf.mxu0
    %v367 = vadd.f32 0.0, %v366
    %368 = vmatmul.f32.gmra.mxu0 %v316
    %v369 = vpop.f32.mrf.mxu0
    %v370 = vadd.f32 0.0, %v369
    %371 = vmatmul.f32.gmra.mxu0 %v318
    %v372 = vpop.f32.mrf.mxu0
    %v373 = vadd.f32 0.0, %v372
    %374 = vmatmul.f32.gmra.mxu0 %v320
    %v375 = vpop.f32.mrf.mxu0
    %v376 = vadd.f32 0.0, %v375
    %377 = vmatmul.f32.gmra.mxu0 %v322
    %v378 = vpop.f32.mrf.mxu0
    %v379 = vadd.f32 0.0, %v378
    %380 = vdwg.mxu0
    %v381 = vsel %vm209, %v358, -3.4028235e+38
    %v382 = vsel %vm210, %v361, -3.4028235e+38
    %v383 = vsel %vm211, %v364, -3.4028235e+38
    %v384 = vsel %vm212, %v367, -3.4028235e+38
    %v385 = vsel %vm213, %v370, -3.4028235e+38
    %v386 = vsel %vm214, %v373, -3.4028235e+38
    %v387 = vsel %vm215, %v376, -3.4028235e+38
    %v388 = vsel %vm216, %v379, -3.4028235e+38
    %vm389 = vcmask 523264
    %v390 = vsel %vm389, %v381, -inf
    %391 = vmax.xlane.f32.xlu0 %v390
    %v392 = vpop.xlane.xlu0 %391
    %v393 = vsel %vm389, %v382, -inf
    %394 = vmax.xlane.f32.xlu0 %v393
    %v395 = vpop.xlane.xlu0 %394
    %v396 = vsel %vm389, %v383, -inf
    %397 = vmax.xlane.f32.xlu0 %v396
    %v398 = vpop.xlane.xlu0 %397
    %v399 = vsel %vm389, %v384, -inf
    %400 = vmax.xlane.f32.xlu0 %v399
    %v401 = vpop.xlane.xlu0 %400
    %v402 = vsel %vm389, %v385, -inf
    %403 = vmax.xlane.f32.xlu0 %v402
    %v404 = vpop.xlane.xlu0 %403
    %v405 = vsel %vm389, %v386, -inf
    %406 = vmax.xlane.f32.xlu0 %v405
    %v407 = vpop.xlane.xlu0 %406
    %v408 = vsel %vm389, %v387, -inf
    %409 = vmax.xlane.f32.xlu0 %v408
    %v410 = vpop.xlane.xlu0 %409
    %v411 = vsel %vm389, %v388, -inf
    %412 = vmax.xlane.f32.xlu0 %v411
    %v413 = vpop.xlane.xlu0 %412
    %v414 = vsub.f32 %v381, %v392
    %v415 = vsub.f32 %v382, %v395
    %v416 = vsub.f32 %v383, %v398
    %v417 = vsub.f32 %v384, %v401
    %v418 = vsub.f32 %v385, %v404
    %v419 = vsub.f32 %v386, %v407
    %v420 = vsub.f32 %v387, %v410
    %v421 = vsub.f32 %v388, %v413
    %v422 = vmul.f32 %v414, 1.442695
    %v423 = vpow.pop %v422
    %v424 = vmul.f32 %v415, 1.442695
    %v425 = vpow.pop %v424
    %v426 = vmul.f32 %v416, 1.442695
    %v427 = vpow.pop %v426
    %v428 = vmul.f32 %v417, 1.442695
    %v429 = vpow.pop %v428
    %v430 = vmul.f32 %v418, 1.442695
    %v431 = vpow.pop %v430
    %v432 = vmul.f32 %v419, 1.442695
    %v433 = vpow.pop %v432
    %v434 = vmul.f32 %v420, 1.442695
    %v435 = vpow.pop %v434
    %v436 = vmul.f32 %v421, 1.442695
    %v437 = vpow.pop %v436
    %v438 = vmul.f32 %v423, %v126
    %v439 = vmul.f32 %v425, %v127
    %v440 = vmul.f32 %v427, %v128
    %v441 = vmul.f32 %v429, %v129
    %v442 = vmul.f32 %v431, %v130
    %v443 = vmul.f32 %v433, %v131
    %v444 = vmul.f32 %v435, %v132
    %v445 = vmul.f32 %v437, %v133
    %v446 = vsel %vm389, %v438, 0.0
    %447 = vadd.xlane.f32.xlu0 %v446
    %v448 = vpop.xlane.xlu0 %447
    %v449 = vsel %vm389, %v439, 0.0
    %450 = vadd.xlane.f32.xlu0 %v449
    %v451 = vpop.xlane.xlu0 %450
    %v452 = vsel %vm389, %v440, 0.0
    %453 = vadd.xlane.f32.xlu0 %v452
    %v454 = vpop.xlane.xlu0 %453
    %v455 = vsel %vm389, %v441, 0.0
    %456 = vadd.xlane.f32.xlu0 %v455
    %v457 = vpop.xlane.xlu0 %456
    %v458 = vsel %vm389, %v442, 0.0
    %459 = vadd.xlane.f32.xlu0 %v458
    %v460 = vpop.xlane.xlu0 %459
    %v461 = vsel %vm389, %v443, 0.0
    %462 = vadd.xlane.f32.xlu0 %v461
    %v463 = vpop.xlane.xlu0 %462
    %v464 = vsel %vm389, %v444, 0.0
    %465 = vadd.xlane.f32.xlu0 %v464
    %v466 = vpop.xlane.xlu0 %465
    %v467 = vsel %vm389, %v445, 0.0
    %468 = vadd.xlane.f32.xlu0 %v467
    %v469 = vpop.xlane.xlu0 %468
    %v470 = vrcp.pop %v448
    %v471 = vrcp.pop %v451
    %v472 = vrcp.pop %v454
    %v473 = vrcp.pop %v457
    %v474 = vrcp.pop %v460
    %v475 = vrcp.pop %v463
    %v476 = vrcp.pop %v466
    %v477 = vrcp.pop %v469
    %v478 = vmul.f32 %v448, %v470
    %v479 = vmul.f32 %v451, %v471
    %v480 = vmul.f32 %v454, %v472
    %v481 = vmul.f32 %v457, %v473
    %v482 = vmul.f32 %v460, %v474
    %v483 = vmul.f32 %v463, %v475
    %v484 = vmul.f32 %v466, %v476
    %v485 = vmul.f32 %v469, %v477
    %v486 = vsub.f32 2.0, %v478
    %v487 = vsub.f32 2.0, %v479
    %v488 = vsub.f32 2.0, %v480
    %v489 = vsub.f32 2.0, %v481
    %v490 = vsub.f32 2.0, %v482
    %v491 = vsub.f32 2.0, %v483
    %v492 = vsub.f32 2.0, %v484
    %v493 = vsub.f32 2.0, %v485
    %v494 = vmul.f32 %v470, %v486
    %v495 = vmul.f32 %v471, %v487
    %v496 = vmul.f32 %v472, %v488
    %v497 = vmul.f32 %v473, %v489
    %v498 = vmul.f32 %v474, %v490
    %v499 = vmul.f32 %v475, %v491
    %v500 = vmul.f32 %v476, %v492
    %v501 = vmul.f32 %v477, %v493
    %502 = vrot.lane.b32.xlu0 %v261, 96
    %v503 = vpop.permute.xlu0 %502
    %504 = vrot.lane.b32.xlu0 %v264, 96
    %v505 = vpop.permute.xlu0 %504
    %506 = vrot.lane.b32.xlu0 %v267, 96
    %v507 = vpop.permute.xlu0 %506
    %508 = vrot.lane.b32.xlu0 %v270, 96
    %v509 = vpop.permute.xlu0 %508
    %510 = vrot.lane.b32.xlu0 %v273, 96
    %v511 = vpop.permute.xlu0 %510
    %512 = vrot.lane.b32.xlu0 %v276, 96
    %v513 = vpop.permute.xlu0 %512
    %514 = vrot.lane.b32.xlu0 %v279, 96
    %v515 = vpop.permute.xlu0 %514
    %516 = vrot.lane.b32.xlu0 %v282, 96
    %v517 = vpop.permute.xlu0 %516
    %v527 = vsel %vm389, %v438, 0
    %v530 = vsel %vm389, %v439, 0
    %v533 = vsel %vm389, %v440, 0
    %v536 = vsel %vm389, %v441, 0
    %v539 = vsel %vm389, %v442, 0
    %v542 = vsel %vm389, %v443, 0
    %v545 = vsel %vm389, %v444, 0
    %v548 = vsel %vm389, %v445, 0
    %550 = vmatpush.msra.mxu0 0.0
    %551 = vmatpush.msra.mxu0 0.0
    %552 = vmatpush.msra.mxu0 0.0
    %553 = vmatpush.msra.mxu0 0.0
    %554 = vmatpush.msra.mxu0 0.0
    %555 = vmatpush.msra.mxu0 0.0
    %556 = vmatpush.msra.mxu0 0.0
    %557 = vmatpush.msra.mxu0 0.0
    %558 = vmatpush.msra.mxu0 %v517
    %559 = vmatpush.msra.mxu0 %v515
    %560 = vmatpush.msra.mxu0 %v513
    %561 = vmatpush.msra.mxu0 %v511
    %562 = vmatpush.msra.mxu0 %v509
    %563 = vmatpush.msra.mxu0 %v507
    %564 = vmatpush.msra.mxu0 %v505
    %565 = vmatpush.msra.mxu0 %v503
    %566 = vmatmul.f32.gmra.mxu0 %v527
    %v567 = vpop.f32.mrf.mxu0
    %v568 = vadd.f32 0.0, %v567
    %569 = vmatmul.f32.gmra.mxu0 %v530
    %v570 = vpop.f32.mrf.mxu0
    %v571 = vadd.f32 0.0, %v570
    %572 = vmatmul.f32.gmra.mxu0 %v533
    %v573 = vpop.f32.mrf.mxu0
    %v574 = vadd.f32 0.0, %v573
    %575 = vmatmul.f32.gmra.mxu0 %v536
    %v576 = vpop.f32.mrf.mxu0
    %v577 = vadd.f32 0.0, %v576
    %578 = vmatmul.f32.gmra.mxu0 %v539
    %v579 = vpop.f32.mrf.mxu0
    %v580 = vadd.f32 0.0, %v579
    %581 = vmatmul.f32.gmra.mxu0 %v542
    %v582 = vpop.f32.mrf.mxu0
    %v583 = vadd.f32 0.0, %v582
    %584 = vmatmul.f32.gmra.mxu0 %v545
    %v585 = vpop.f32.mrf.mxu0
    %v586 = vadd.f32 0.0, %v585
    %587 = vmatmul.f32.gmra.mxu0 %v548
    %v588 = vpop.f32.mrf.mxu0
    %v589 = vadd.f32 0.0, %v588
    %590 = vdwg.mxu0
    %v591 = vmul.f32 %v568, %v494
    %v592 = vmul.f32 %v571, %v495
    %v593 = vmul.f32 %v574, %v496
    %v594 = vmul.f32 %v577, %v497
    %v595 = vmul.f32 %v580, %v498
    %v596 = vmul.f32 %v583, %v499
    %v597 = vmul.f32 %v586, %v500
    %v598 = vmul.f32 %v589, %v501
    %v599 = vadd.f32 %v109, %v591
    %v600 = vadd.f32 %v110, %v592
    %v601 = vadd.f32 %v111, %v593
    %v602 = vadd.f32 %v112, %v594
    %v603 = vadd.f32 %v113, %v595
    %v604 = vadd.f32 %v114, %v596
    %v605 = vadd.f32 %v115, %v597
    %v606 = vadd.f32 %v116, %v598
    %607 = vrot.lane.b32.xlu0 %v261, 120
    %v608 = vpop.permute.xlu0 %607
    %609 = vrot.lane.b32.xlu0 %v264, 120
    %v610 = vpop.permute.xlu0 %609
    %611 = vrot.lane.b32.xlu0 %v267, 120
    %v612 = vpop.permute.xlu0 %611
    %613 = vrot.lane.b32.xlu0 %v270, 120
    %v614 = vpop.permute.xlu0 %613
    %615 = vrot.lane.b32.xlu0 %v273, 120
    %v616 = vpop.permute.xlu0 %615
    %617 = vrot.lane.b32.xlu0 %v276, 120
    %v618 = vpop.permute.xlu0 %617
    %619 = vrot.lane.b32.xlu0 %v279, 120
    %v620 = vpop.permute.xlu0 %619
    %621 = vrot.lane.b32.xlu0 %v282, 120
    %v622 = vpop.permute.xlu0 %621
    %623 = vrot.lane.b32.xlu0 %v261, 104
    %v624 = vpop.permute.xlu0 %623
    %625 = vrot.lane.b32.xlu0 %v264, 104
    %v626 = vpop.permute.xlu0 %625
    %627 = vrot.lane.b32.xlu0 %v267, 104
    %v628 = vpop.permute.xlu0 %627
    %629 = vrot.lane.b32.xlu0 %v270, 104
    %v630 = vpop.permute.xlu0 %629
    %631 = vrot.lane.b32.xlu0 %v273, 104
    %v632 = vpop.permute.xlu0 %631
    %633 = vrot.lane.b32.xlu0 %v276, 104
    %v634 = vpop.permute.xlu0 %633
    %635 = vrot.lane.b32.xlu0 %v279, 104
    %v636 = vpop.permute.xlu0 %635
    %637 = vrot.lane.b32.xlu0 %v282, 104
    %v638 = vpop.permute.xlu0 %637
    %v639 = vsel %vm218, %v608, 0
    %v641 = vsel %vm218, %v610, 0
    %v643 = vsel %vm218, %v612, 0
    %v645 = vsel %vm218, %v614, 0
    %v647 = vsel %vm218, %v616, 0
    %v649 = vsel %vm218, %v618, 0
    %v651 = vsel %vm218, %v620, 0
    %v653 = vsel %vm218, %v622, 0
    %v655 = vsel %vm218, %v624, 0
    %v657 = vsel %vm218, %v626, 0
    %v659 = vsel %vm218, %v628, 0
    %v661 = vsel %vm218, %v630, 0
    %v663 = vsel %vm218, %v632, 0
    %v665 = vsel %vm218, %v634, 0
    %v667 = vsel %vm218, %v636, 0
    %v669 = vsel %vm218, %v638, 0
    %671 = vmatpush.xpose.msra.mxu0 0.0
    %672 = vmatpush.xpose.msra.mxu0 0.0
    %673 = vmatpush.xpose.msra.mxu0 0.0
    %674 = vmatpush.xpose.msra.mxu0 0.0
    %675 = vmatpush.xpose.msra.mxu0 0.0
    %676 = vmatpush.xpose.msra.mxu0 0.0
    %677 = vmatpush.xpose.msra.mxu0 0.0
    %678 = vmatpush.xpose.msra.mxu0 0.0
    %679 = vmatpush.xpose.msra.mxu0 %v669
    %680 = vmatpush.xpose.msra.mxu0 %v667
    %681 = vmatpush.xpose.msra.mxu0 %v665
    %682 = vmatpush.xpose.msra.mxu0 %v663
    %683 = vmatpush.xpose.msra.mxu0 %v661
    %684 = vmatpush.xpose.msra.mxu0 %v659
    %685 = vmatpush.xpose.msra.mxu0 %v657
    %686 = vmatpush.xpose.msra.mxu0 %v655
    %687 = vmatmul.f32.gmra.mxu0 %v639
    %v688 = vpop.f32.mrf.mxu0
    %v689 = vadd.f32 0.0, %v688
    %690 = vmatmul.f32.gmra.mxu0 %v641
    %v691 = vpop.f32.mrf.mxu0
    %v692 = vadd.f32 0.0, %v691
    %693 = vmatmul.f32.gmra.mxu0 %v643
    %v694 = vpop.f32.mrf.mxu0
    %v695 = vadd.f32 0.0, %v694
    %696 = vmatmul.f32.gmra.mxu0 %v645
    %v697 = vpop.f32.mrf.mxu0
    %v698 = vadd.f32 0.0, %v697
    %699 = vmatmul.f32.gmra.mxu0 %v647
    %v700 = vpop.f32.mrf.mxu0
    %v701 = vadd.f32 0.0, %v700
    %702 = vmatmul.f32.gmra.mxu0 %v649
    %v703 = vpop.f32.mrf.mxu0
    %v704 = vadd.f32 0.0, %v703
    %705 = vmatmul.f32.gmra.mxu0 %v651
    %v706 = vpop.f32.mrf.mxu0
    %v707 = vadd.f32 0.0, %v706
    %708 = vmatmul.f32.gmra.mxu0 %v653
    %v709 = vpop.f32.mrf.mxu0
    %v710 = vadd.f32 0.0, %v709
    %711 = vdwg.mxu0
    %v712 = vsel %vm209, %v689, -3.4028235e+38
    %v713 = vsel %vm210, %v692, -3.4028235e+38
    %v714 = vsel %vm211, %v695, -3.4028235e+38
    %v715 = vsel %vm212, %v698, -3.4028235e+38
    %v716 = vsel %vm213, %v701, -3.4028235e+38
    %v717 = vsel %vm214, %v704, -3.4028235e+38
    %v718 = vsel %vm215, %v707, -3.4028235e+38
    %v719 = vsel %vm216, %v710, -3.4028235e+38
    %v720 = vsel %vm389, %v712, -inf
    %721 = vmax.xlane.f32.xlu0 %v720
    %v722 = vpop.xlane.xlu0 %721
    %v723 = vsel %vm389, %v713, -inf
    %724 = vmax.xlane.f32.xlu0 %v723
    %v725 = vpop.xlane.xlu0 %724
    %v726 = vsel %vm389, %v714, -inf
    %727 = vmax.xlane.f32.xlu0 %v726
    %v728 = vpop.xlane.xlu0 %727
    %v729 = vsel %vm389, %v715, -inf
    %730 = vmax.xlane.f32.xlu0 %v729
    %v731 = vpop.xlane.xlu0 %730
    %v732 = vsel %vm389, %v716, -inf
    %733 = vmax.xlane.f32.xlu0 %v732
    %v734 = vpop.xlane.xlu0 %733
    %v735 = vsel %vm389, %v717, -inf
    %736 = vmax.xlane.f32.xlu0 %v735
    %v737 = vpop.xlane.xlu0 %736
    %v738 = vsel %vm389, %v718, -inf
    %739 = vmax.xlane.f32.xlu0 %v738
    %v740 = vpop.xlane.xlu0 %739
    %v741 = vsel %vm389, %v719, -inf
    %742 = vmax.xlane.f32.xlu0 %v741
    %v743 = vpop.xlane.xlu0 %742
    %v744 = vsub.f32 %v712, %v722
    %v745 = vsub.f32 %v713, %v725
    %v746 = vsub.f32 %v714, %v728
    %v747 = vsub.f32 %v715, %v731
    %v748 = vsub.f32 %v716, %v734
    %v749 = vsub.f32 %v717, %v737
    %v750 = vsub.f32 %v718, %v740
    %v751 = vsub.f32 %v719, %v743
    %v752 = vmul.f32 %v744, 1.442695
    %v753 = vpow.pop %v752
    %v754 = vmul.f32 %v745, 1.442695
    %v755 = vpow.pop %v754
    %v756 = vmul.f32 %v746, 1.442695
    %v757 = vpow.pop %v756
    %v758 = vmul.f32 %v747, 1.442695
    %v759 = vpow.pop %v758
    %v760 = vmul.f32 %v748, 1.442695
    %v761 = vpow.pop %v760
    %v762 = vmul.f32 %v749, 1.442695
    %v763 = vpow.pop %v762
    %v764 = vmul.f32 %v750, 1.442695
    %v765 = vpow.pop %v764
    %v766 = vmul.f32 %v751, 1.442695
    %v767 = vpow.pop %v766
    %v768 = vmul.f32 %v753, %v126
    %v769 = vmul.f32 %v755, %v127
    %v770 = vmul.f32 %v757, %v128
    %v771 = vmul.f32 %v759, %v129
    %v772 = vmul.f32 %v761, %v130
    %v773 = vmul.f32 %v763, %v131
    %v774 = vmul.f32 %v765, %v132
    %v775 = vmul.f32 %v767, %v133
    %v776 = vsel %vm389, %v768, 0.0
    %777 = vadd.xlane.f32.xlu0 %v776
    %v778 = vpop.xlane.xlu0 %777
    %v779 = vsel %vm389, %v769, 0.0
    %780 = vadd.xlane.f32.xlu0 %v779
    %v781 = vpop.xlane.xlu0 %780
    %v782 = vsel %vm389, %v770, 0.0
    %783 = vadd.xlane.f32.xlu0 %v782
    %v784 = vpop.xlane.xlu0 %783
    %v785 = vsel %vm389, %v771, 0.0
    %786 = vadd.xlane.f32.xlu0 %v785
    %v787 = vpop.xlane.xlu0 %786
    %v788 = vsel %vm389, %v772, 0.0
    %789 = vadd.xlane.f32.xlu0 %v788
    %v790 = vpop.xlane.xlu0 %789
    %v791 = vsel %vm389, %v773, 0.0
    %792 = vadd.xlane.f32.xlu0 %v791
    %v793 = vpop.xlane.xlu0 %792
    %v794 = vsel %vm389, %v774, 0.0
    %795 = vadd.xlane.f32.xlu0 %v794
    %v796 = vpop.xlane.xlu0 %795
    %v797 = vsel %vm389, %v775, 0.0
    %798 = vadd.xlane.f32.xlu0 %v797
    %v799 = vpop.xlane.xlu0 %798
    %v800 = vrcp.pop %v778
    %v801 = vrcp.pop %v781
    %v802 = vrcp.pop %v784
    %v803 = vrcp.pop %v787
    %v804 = vrcp.pop %v790
    %v805 = vrcp.pop %v793
    %v806 = vrcp.pop %v796
    %v807 = vrcp.pop %v799
    %v808 = vmul.f32 %v778, %v800
    %v809 = vmul.f32 %v781, %v801
    %v810 = vmul.f32 %v784, %v802
    %v811 = vmul.f32 %v787, %v803
    %v812 = vmul.f32 %v790, %v804
    %v813 = vmul.f32 %v793, %v805
    %v814 = vmul.f32 %v796, %v806
    %v815 = vmul.f32 %v799, %v807
    %v816 = vsub.f32 2.0, %v808
    %v817 = vsub.f32 2.0, %v809
    %v818 = vsub.f32 2.0, %v810
    %v819 = vsub.f32 2.0, %v811
    %v820 = vsub.f32 2.0, %v812
    %v821 = vsub.f32 2.0, %v813
    %v822 = vsub.f32 2.0, %v814
    %v823 = vsub.f32 2.0, %v815
    %v824 = vmul.f32 %v800, %v816
    %v825 = vmul.f32 %v801, %v817
    %v826 = vmul.f32 %v802, %v818
    %v827 = vmul.f32 %v803, %v819
    %v828 = vmul.f32 %v804, %v820
    %v829 = vmul.f32 %v805, %v821
    %v830 = vmul.f32 %v806, %v822
    %v831 = vmul.f32 %v807, %v823
    %832 = vrot.lane.b32.xlu0 %v261, 88
    %v833 = vpop.permute.xlu0 %832
    %834 = vrot.lane.b32.xlu0 %v264, 88
    %v835 = vpop.permute.xlu0 %834
    %836 = vrot.lane.b32.xlu0 %v267, 88
    %v837 = vpop.permute.xlu0 %836
    %838 = vrot.lane.b32.xlu0 %v270, 88
    %v839 = vpop.permute.xlu0 %838
    %840 = vrot.lane.b32.xlu0 %v273, 88
    %v841 = vpop.permute.xlu0 %840
    %842 = vrot.lane.b32.xlu0 %v276, 88
    %v843 = vpop.permute.xlu0 %842
    %844 = vrot.lane.b32.xlu0 %v279, 88
    %v845 = vpop.permute.xlu0 %844
    %846 = vrot.lane.b32.xlu0 %v282, 88
    %v847 = vpop.permute.xlu0 %846
    %v857 = vsel %vm389, %v768, 0
    %v860 = vsel %vm389, %v769, 0
    %v863 = vsel %vm389, %v770, 0
    %v866 = vsel %vm389, %v771, 0
    %v869 = vsel %vm389, %v772, 0
    %v872 = vsel %vm389, %v773, 0
    %v875 = vsel %vm389, %v774, 0
    %v878 = vsel %vm389, %v775, 0
    %880 = vmatpush.msra.mxu0 0.0
    %881 = vmatpush.msra.mxu0 0.0
    %882 = vmatpush.msra.mxu0 0.0
    %883 = vmatpush.msra.mxu0 0.0
    %884 = vmatpush.msra.mxu0 0.0
    %885 = vmatpush.msra.mxu0 0.0
    %886 = vmatpush.msra.mxu0 0.0
    %887 = vmatpush.msra.mxu0 0.0
    %888 = vmatpush.msra.mxu0 %v847
    %889 = vmatpush.msra.mxu0 %v845
    %890 = vmatpush.msra.mxu0 %v843
    %891 = vmatpush.msra.mxu0 %v841
    %892 = vmatpush.msra.mxu0 %v839
    %893 = vmatpush.msra.mxu0 %v837
    %894 = vmatpush.msra.mxu0 %v835
    %895 = vmatpush.msra.mxu0 %v833
    %896 = vmatmul.f32.gmra.mxu0 %v857
    %v897 = vpop.f32.mrf.mxu0
    %v898 = vadd.f32 0.0, %v897
    %899 = vmatmul.f32.gmra.mxu0 %v860
    %v900 = vpop.f32.mrf.mxu0
    %v901 = vadd.f32 0.0, %v900
    %902 = vmatmul.f32.gmra.mxu0 %v863
    %v903 = vpop.f32.mrf.mxu0
    %v904 = vadd.f32 0.0, %v903
    %905 = vmatmul.f32.gmra.mxu0 %v866
    %v906 = vpop.f32.mrf.mxu0
    %v907 = vadd.f32 0.0, %v906
    %908 = vmatmul.f32.gmra.mxu0 %v869
    %v909 = vpop.f32.mrf.mxu0
    %v910 = vadd.f32 0.0, %v909
    %911 = vmatmul.f32.gmra.mxu0 %v872
    %v912 = vpop.f32.mrf.mxu0
    %v913 = vadd.f32 0.0, %v912
    %914 = vmatmul.f32.gmra.mxu0 %v875
    %v915 = vpop.f32.mrf.mxu0
    %v916 = vadd.f32 0.0, %v915
    %917 = vmatmul.f32.gmra.mxu0 %v878
    %v918 = vpop.f32.mrf.mxu0
    %v919 = vadd.f32 0.0, %v918
    %920 = vdwg.mxu0
    %v921 = vmul.f32 %v898, %v824
    %v922 = vmul.f32 %v901, %v825
    %v923 = vmul.f32 %v904, %v826
    %v924 = vmul.f32 %v907, %v827
    %v925 = vmul.f32 %v910, %v828
    %v926 = vmul.f32 %v913, %v829
    %v927 = vmul.f32 %v916, %v830
    %v928 = vmul.f32 %v919, %v831
    %v929 = vadd.f32 %v599, %v921
    %v930 = vadd.f32 %v600, %v922
    %v931 = vadd.f32 %v601, %v923
    %v932 = vadd.f32 %v602, %v924
    %v933 = vadd.f32 %v603, %v925
    %v934 = vadd.f32 %v604, %v926
    %v935 = vadd.f32 %v605, %v927
    %v936 = vadd.f32 %v606, %v928
    %v937 = vld [vmem:[#allocation6] sm:$0xff]
    %v938 = vld [vmem:[#allocation7] sm:$0xff]
    %v939 = vld [vmem:[%s10] sm:$0xff]
    %v940 = vld [vmem:[#allocation9] sm:$0xff]
    %v941 = vmul.f32 %v929, %v929
    %v942 = vmul.f32 %v930, %v930
    %v943 = vmul.f32 %v931, %v931
    %v944 = vmul.f32 %v932, %v932
    %v945 = vmul.f32 %v933, %v933
    %v946 = vmul.f32 %v934, %v934
    %v947 = vmul.f32 %v935, %v935
    %v948 = vmul.f32 %v936, %v936
    %957 = vrot.lane.b32.xlu0 %v941, 8
    %v958 = vpop.permute.xlu0 %957
    %959 = vrot.lane.b32.xlu0 %v942, 8
    %v960 = vpop.permute.xlu0 %959
    %961 = vrot.lane.b32.xlu0 %v943, 8
    %v962 = vpop.permute.xlu0 %961
    %963 = vrot.lane.b32.xlu0 %v944, 8
    %v964 = vpop.permute.xlu0 %963
    %965 = vrot.lane.b32.xlu0 %v945, 8
    %v966 = vpop.permute.xlu0 %965
    %967 = vrot.lane.b32.xlu0 %v946, 8
    %v968 = vpop.permute.xlu0 %967
    %969 = vrot.lane.b32.xlu0 %v947, 8
    %v970 = vpop.permute.xlu0 %969
    %971 = vrot.lane.b32.xlu0 %v948, 8
    %v972 = vpop.permute.xlu0 %971
    %v981 = vsel %vm218, %v929, %v958
    %v982 = vsel %vm218, %v930, %v960
    %v983 = vsel %vm218, %v931, %v962
    %v984 = vsel %vm218, %v932, %v964
    %v985 = vsel %vm218, %v933, %v966
    %v986 = vsel %vm218, %v934, %v968
    %v987 = vsel %vm218, %v935, %v970
    %v988 = vsel %vm218, %v936, %v972
    %v990 = vsel %vm389, %v134, 0
    %v993 = vsel %vm389, %v135, 0
    %v996 = vsel %vm389, %v136, 0
    %v999 = vsel %vm389, %v137, 0
    %v1002 = vsel %vm389, %v138, 0
    %v1005 = vsel %vm389, %v139, 0
    %v1008 = vsel %vm389, %v140, 0
    %v1011 = vsel %vm389, %v141, 0
    %1013 = vmatpush.msra.mxu0 0.0
    %1014 = vmatpush.msra.mxu0 0.0
    %1015 = vmatpush.msra.mxu0 0.0
    %1016 = vmatpush.msra.mxu0 0.0
    %1017 = vmatpush.msra.mxu0 0.0
    %1018 = vmatpush.msra.mxu0 0.0
    %1019 = vmatpush.msra.mxu0 0.0
    %1020 = vmatpush.msra.mxu0 0.0
    %1021 = vmatpush.msra.mxu0 %v988
    %1022 = vmatpush.msra.mxu0 %v987
    %1023 = vmatpush.msra.mxu0 %v986
    %1024 = vmatpush.msra.mxu0 %v985
    %1025 = vmatpush.msra.mxu0 %v984
    %1026 = vmatpush.msra.mxu0 %v983
    %1027 = vmatpush.msra.mxu0 %v982
    %1028 = vmatpush.msra.mxu0 %v981
    %1029 = vmatmul.f32.gmra.mxu0 %v990
    %v1030 = vpop.f32.mrf.mxu0
    %v1031 = vadd.f32 0.0, %v1030
    %1032 = vmatmul.f32.gmra.mxu0 %v993
    %v1033 = vpop.f32.mrf.mxu0
    %v1034 = vadd.f32 0.0, %v1033
    %1035 = vmatmul.f32.gmra.mxu0 %v996
    %v1036 = vpop.f32.mrf.mxu0
    %v1037 = vadd.f32 0.0, %v1036
    %1038 = vmatmul.f32.gmra.mxu0 %v999
    %v1039 = vpop.f32.mrf.mxu0
    %v1040 = vadd.f32 0.0, %v1039
    %1041 = vmatmul.f32.gmra.mxu0 %v1002
    %v1042 = vpop.f32.mrf.mxu0
    %v1043 = vadd.f32 0.0, %v1042
    %1044 = vmatmul.f32.gmra.mxu0 %v1005
    %v1045 = vpop.f32.mrf.mxu0
    %v1046 = vadd.f32 0.0, %v1045
    %1047 = vmatmul.f32.gmra.mxu0 %v1008
    %v1048 = vpop.f32.mrf.mxu0
    %v1049 = vadd.f32 0.0, %v1048
    %1050 = vmatmul.f32.gmra.mxu0 %v1011
    %v1051 = vpop.f32.mrf.mxu0
    %v1052 = vadd.f32 0.0, %v1051
    %1053 = vdwg.mxu0
    %v1054 = vsel %vm218, %v1031, 0.0
    %1055 = vadd.xlane.f32.xlu0 %v1054
    %v1056 = vpop.xlane.xlu0 %1055
    %v1057 = vsel %vm218, %v1034, 0.0
    %1058 = vadd.xlane.f32.xlu0 %v1057
    %v1059 = vpop.xlane.xlu0 %1058
    %v1060 = vsel %vm218, %v1037, 0.0
    %1061 = vadd.xlane.f32.xlu0 %v1060
    %v1062 = vpop.xlane.xlu0 %1061
    %v1063 = vsel %vm218, %v1040, 0.0
    %1064 = vadd.xlane.f32.xlu0 %v1063
    %v1065 = vpop.xlane.xlu0 %1064
    %v1066 = vsel %vm218, %v1043, 0.0
    %1067 = vadd.xlane.f32.xlu0 %v1066
    %v1068 = vpop.xlane.xlu0 %1067
    %v1069 = vsel %vm218, %v1046, 0.0
    %1070 = vadd.xlane.f32.xlu0 %v1069
    %v1071 = vpop.xlane.xlu0 %1070
    %v1072 = vsel %vm218, %v1049, 0.0
    %1073 = vadd.xlane.f32.xlu0 %v1072
    %v1074 = vpop.xlane.xlu0 %1073
    %v1075 = vsel %vm218, %v1052, 0.0
    %1076 = vadd.xlane.f32.xlu0 %v1075
    %v1077 = vpop.xlane.xlu0 %1076
    %1086 = vrot.lane.b32.xlu0 %v1031, 120
    %v1087 = vpop.permute.xlu0 %1086
    %1088 = vrot.lane.b32.xlu0 %v1034, 120
    %v1089 = vpop.permute.xlu0 %1088
    %1090 = vrot.lane.b32.xlu0 %v1037, 120
    %v1091 = vpop.permute.xlu0 %1090
    %1092 = vrot.lane.b32.xlu0 %v1040, 120
    %v1093 = vpop.permute.xlu0 %1092
    %1094 = vrot.lane.b32.xlu0 %v1043, 120
    %v1095 = vpop.permute.xlu0 %1094
    %1096 = vrot.lane.b32.xlu0 %v1046, 120
    %v1097 = vpop.permute.xlu0 %1096
    %1098 = vrot.lane.b32.xlu0 %v1049, 120
    %v1099 = vpop.permute.xlu0 %1098
    %1100 = vrot.lane.b32.xlu0 %v1052, 120
    %v1101 = vpop.permute.xlu0 %1100
    %v1110 = vsel %vm218, %v1087, 0.0
    %1111 = vadd.xlane.f32.xlu0 %v1110
    %v1112 = vpop.xlane.xlu0 %1111
    %v1113 = vsel %vm218, %v1089, 0.0
    %1114 = vadd.xlane.f32.xlu0 %v1113
    %v1115 = vpop.xlane.xlu0 %1114
    %v1116 = vsel %vm218, %v1091, 0.0
    %1117 = vadd.xlane.f32.xlu0 %v1116
    %v1118 = vpop.xlane.xlu0 %1117
    %v1119 = vsel %vm218, %v1093, 0.0
    %1120 = vadd.xlane.f32.xlu0 %v1119
    %v1121 = vpop.xlane.xlu0 %1120
    %v1122 = vsel %vm218, %v1095, 0.0
    %1123 = vadd.xlane.f32.xlu0 %v1122
    %v1124 = vpop.xlane.xlu0 %1123
    %v1125 = vsel %vm218, %v1097, 0.0
    %1126 = vadd.xlane.f32.xlu0 %v1125
    %v1127 = vpop.xlane.xlu0 %1126
    %v1128 = vsel %vm218, %v1099, 0.0
    %1129 = vadd.xlane.f32.xlu0 %v1128
    %v1130 = vpop.xlane.xlu0 %1129
    %v1131 = vsel %vm218, %v1101, 0.0
    %1132 = vadd.xlane.f32.xlu0 %v1131
    %v1133 = vpop.xlane.xlu0 %1132
    %v1134 = vmul.f32 %v1056, %v1056
    %v1135 = vmul.f32 %v1059, %v1059
    %v1136 = vmul.f32 %v1062, %v1062
    %v1137 = vmul.f32 %v1065, %v1065
    %v1138 = vmul.f32 %v1068, %v1068
    %v1139 = vmul.f32 %v1071, %v1071
    %v1140 = vmul.f32 %v1074, %v1074
    %v1141 = vmul.f32 %v1077, %v1077
    %v1142 = vsub.f32 %v1112, %v1134
    %v1143 = vsub.f32 %v1115, %v1135
    %v1144 = vsub.f32 %v1118, %v1136
    %v1145 = vsub.f32 %v1121, %v1137
    %v1146 = vsub.f32 %v1124, %v1138
    %v1147 = vsub.f32 %v1127, %v1139
    %v1148 = vsub.f32 %v1130, %v1140
    %v1149 = vsub.f32 %v1133, %v1141
    %v1150 = vadd.f32 %v1142, 1e-05
    %v1151 = vadd.f32 %v1143, 1e-05
    %v1152 = vadd.f32 %v1144, 1e-05
    %v1153 = vadd.f32 %v1145, 1e-05
    %v1154 = vadd.f32 %v1146, 1e-05
    %v1155 = vadd.f32 %v1147, 1e-05
    %v1156 = vadd.f32 %v1148, 1e-05
    %v1157 = vadd.f32 %v1149, 1e-05
    %v1158 = vrsqrt.pop %v1150
    %v1159 = vmul.f32 %v1158, %v1150
    %v1160 = vmul.f32 %v1159, %v1158
    %v1161 = vmul.f32 0.5, %v1160
    %v1162 = vsub.f32 1.5, %v1161
    %v1163 = vmul.f32 %v1158, %v1162
    %vm1164 = vweird.f32 %v1150
    %vm1165 = vweird.f32 %v1158
    %vm1166 = vmor %vm1164, %vm1165
    %v1167 = vsel %vm1166, %v1158, %v1163
    %v1168 = vrsqrt.pop %v1151
    %v1169 = vmul.f32 %v1168, %v1151
    %v1170 = vmul.f32 %v1169, %v1168
    %v1171 = vmul.f32 0.5, %v1170
    %v1172 = vsub.f32 1.5, %v1171
    %v1173 = vmul.f32 %v1168, %v1172
    %vm1174 = vweird.f32 %v1151
    %vm1175 = vweird.f32 %v1168
    %vm1176 = vmor %vm1174, %vm1175
    %v1177 = vsel %vm1176, %v1168, %v1173
    %v1178 = vrsqrt.pop %v1152
    %v1179 = vmul.f32 %v1178, %v1152
    %v1180 = vmul.f32 %v1179, %v1178
    %v1181 = vmul.f32 0.5, %v1180
    %v1182 = vsub.f32 1.5, %v1181
    %v1183 = vmul.f32 %v1178, %v1182
    %vm1184 = vweird.f32 %v1152
    %vm1185 = vweird.f32 %v1178
    %vm1186 = vmor %vm1184, %vm1185
    %v1187 = vsel %vm1186, %v1178, %v1183
    %v1188 = vrsqrt.pop %v1153
    %v1189 = vmul.f32 %v1188, %v1153
    %v1190 = vmul.f32 %v1189, %v1188
    %v1191 = vmul.f32 0.5, %v1190
    %v1192 = vsub.f32 1.5, %v1191
    %v1193 = vmul.f32 %v1188, %v1192
    %vm1194 = vweird.f32 %v1153
    %vm1195 = vweird.f32 %v1188
    %vm1196 = vmor %vm1194, %vm1195
    %v1197 = vsel %vm1196, %v1188, %v1193
    %v1198 = vrsqrt.pop %v1154
    %v1199 = vmul.f32 %v1198, %v1154
    %v1200 = vmul.f32 %v1199, %v1198
    %v1201 = vmul.f32 0.5, %v1200
    %v1202 = vsub.f32 1.5, %v1201
    %v1203 = vmul.f32 %v1198, %v1202
    %vm1204 = vweird.f32 %v1154
    %vm1205 = vweird.f32 %v1198
    %vm1206 = vmor %vm1204, %vm1205
    %v1207 = vsel %vm1206, %v1198, %v1203
    %v1208 = vrsqrt.pop %v1155
    %v1209 = vmul.f32 %v1208, %v1155
    %v1210 = vmul.f32 %v1209, %v1208
    %v1211 = vmul.f32 0.5, %v1210
    %v1212 = vsub.f32 1.5, %v1211
    %v1213 = vmul.f32 %v1208, %v1212
    %vm1214 = vweird.f32 %v1155
    %vm1215 = vweird.f32 %v1208
    %vm1216 = vmor %vm1214, %vm1215
    %v1217 = vsel %vm1216, %v1208, %v1213
    %v1218 = vrsqrt.pop %v1156
    %v1219 = vmul.f32 %v1218, %v1156
    %v1220 = vmul.f32 %v1219, %v1218
    %v1221 = vmul.f32 0.5, %v1220
    %v1222 = vsub.f32 1.5, %v1221
    %v1223 = vmul.f32 %v1218, %v1222
    %vm1224 = vweird.f32 %v1156
    %vm1225 = vweird.f32 %v1218
    %vm1226 = vmor %vm1224, %vm1225
    %v1227 = vsel %vm1226, %v1218, %v1223
    %v1228 = vrsqrt.pop %v1157
    %v1229 = vmul.f32 %v1228, %v1157
    %v1230 = vmul.f32 %v1229, %v1228
    %v1231 = vmul.f32 0.5, %v1230
    %v1232 = vsub.f32 1.5, %v1231
    %v1233 = vmul.f32 %v1228, %v1232
    %vm1234 = vweird.f32 %v1157
    %vm1235 = vweird.f32 %v1228
    %vm1236 = vmor %vm1234, %vm1235
    %v1237 = vsel %vm1236, %v1228, %v1233
    %v1238 = vsub.f32 %v929, %v1056
    %v1239 = vsub.f32 %v930, %v1059
    %v1240 = vsub.f32 %v931, %v1062
    %v1241 = vsub.f32 %v932, %v1065
    %v1242 = vsub.f32 %v933, %v1068
    %v1243 = vsub.f32 %v934, %v1071
    %v1244 = vsub.f32 %v935, %v1074
    %v1245 = vsub.f32 %v936, %v1077
    %v1246 = vmul.f32 %v1238, %v1167
    %v1247 = vmul.f32 %v1239, %v1177
    %v1248 = vmul.f32 %v1240, %v1187
    %v1249 = vmul.f32 %v1241, %v1197
    %v1250 = vmul.f32 %v1242, %v1207
    %v1251 = vmul.f32 %v1243, %v1217
    %v1252 = vmul.f32 %v1244, %v1227
    %v1253 = vmul.f32 %v1245, %v1237
    %v1254 = vmul.f32 %v1246, %v937
    %v1255 = vmul.f32 %v1247, %v937
    %v1256 = vmul.f32 %v1248, %v937
    %v1257 = vmul.f32 %v1249, %v937
    %v1258 = vmul.f32 %v1250, %v937
    %v1259 = vmul.f32 %v1251, %v937
    %v1260 = vmul.f32 %v1252, %v937
    %v1261 = vmul.f32 %v1253, %v937
    %v1262 = vadd.f32 %v1254, %v938
    %v1263 = vadd.f32 %v1255, %v938
    %v1264 = vadd.f32 %v1256, %v938
    %v1265 = vadd.f32 %v1257, %v938
    %v1266 = vadd.f32 %v1258, %v938
    %v1267 = vadd.f32 %v1259, %v938
    %v1268 = vadd.f32 %v1260, %v938
    %v1269 = vadd.f32 %v1261, %v938
    %v1270 = vld [vmem:[#allocation4] sm:$0xff]
    %v1271 = vld [vmem:[%s7] sm:$0x1]
    %v1273 = vperm.slane %v1271, 0
    %v1276 = vsel %vm218, %v1262, 0
    %v1279 = vsel %vm218, %v1263, 0
    %v1282 = vsel %vm218, %v1264, 0
    %v1285 = vsel %vm218, %v1265, 0
    %v1288 = vsel %vm218, %v1266, 0
    %v1291 = vsel %vm218, %v1267, 0
    %v1294 = vsel %vm218, %v1268, 0
    %v1297 = vsel %vm218, %v1269, 0
    %1299 = vmatpush.msra.mxu0 0.0
    %1300 = vmatpush.msra.mxu0 0.0
    %1301 = vmatpush.msra.mxu0 0.0
    %1302 = vmatpush.msra.mxu0 0.0
    %1303 = vmatpush.msra.mxu0 0.0
    %1304 = vmatpush.msra.mxu0 0.0
    %1305 = vmatpush.msra.mxu0 0.0
    %1306 = vmatpush.msra.mxu0 0.0
    %1307 = vmatpush.msra.mxu0 0.0
    %1308 = vmatpush.msra.mxu0 0.0
    %1309 = vmatpush.msra.mxu0 0.0
    %1310 = vmatpush.msra.mxu0 0.0
    %1311 = vmatpush.msra.mxu0 0.0
    %1312 = vmatpush.msra.mxu0 0.0
    %1313 = vmatpush.msra.mxu0 0.0
    %1314 = vmatpush.msra.mxu0 %v1270
    %1315 = vmatmul.f32.gmra.mxu0 %v1276
    %v1316 = vpop.f32.mrf.mxu0
    %v1317 = vadd.f32 %v1273, %v1316
    %1318 = vmatmul.f32.gmra.mxu0 %v1279
    %v1319 = vpop.f32.mrf.mxu0
    %v1320 = vadd.f32 %v1273, %v1319
    %1321 = vmatmul.f32.gmra.mxu0 %v1282
    %v1322 = vpop.f32.mrf.mxu0
    %v1323 = vadd.f32 %v1273, %v1322
    %1324 = vmatmul.f32.gmra.mxu0 %v1285
    %v1325 = vpop.f32.mrf.mxu0
    %v1326 = vadd.f32 %v1273, %v1325
    %1327 = vmatmul.f32.gmra.mxu0 %v1288
    %v1328 = vpop.f32.mrf.mxu0
    %v1329 = vadd.f32 %v1273, %v1328
    %1330 = vmatmul.f32.gmra.mxu0 %v1291
    %v1331 = vpop.f32.mrf.mxu0
    %v1332 = vadd.f32 %v1273, %v1331
    %1333 = vmatmul.f32.gmra.mxu0 %v1294
    %v1334 = vpop.f32.mrf.mxu0
    %v1335 = vadd.f32 %v1273, %v1334
    %1336 = vmatmul.f32.gmra.mxu0 %v1297
    %v1337 = vpop.f32.mrf.mxu0
    %v1338 = vadd.f32 %v1273, %v1337
    %1339 = vdwg.mxu0
    %v1340 = vmax.f32 %v1317, 0.0
    %v1341 = vmax.f32 %v1320, 0.0
    %v1342 = vmax.f32 %v1323, 0.0
    %v1343 = vmax.f32 %v1326, 0.0
    %v1344 = vmax.f32 %v1329, 0.0
    %v1345 = vmax.f32 %v1332, 0.0
    %v1346 = vmax.f32 %v1335, 0.0
    %v1347 = vmax.f32 %v1338, 0.0
    %v1348 = vadd.f32 %v1340, %v1262
    %v1349 = vadd.f32 %v1341, %v1263
    %v1350 = vadd.f32 %v1342, %v1264
    %v1351 = vadd.f32 %v1343, %v1265
    %v1352 = vadd.f32 %v1344, %v1266
    %v1353 = vadd.f32 %v1345, %v1267
    %v1354 = vadd.f32 %v1346, %v1268
    %v1355 = vadd.f32 %v1347, %v1269
    %v1356 = vmul.f32 %v1348, %v1348
    %v1357 = vmul.f32 %v1349, %v1349
    %v1358 = vmul.f32 %v1350, %v1350
    %v1359 = vmul.f32 %v1351, %v1351
    %v1360 = vmul.f32 %v1352, %v1352
    %v1361 = vmul.f32 %v1353, %v1353
    %v1362 = vmul.f32 %v1354, %v1354
    %v1363 = vmul.f32 %v1355, %v1355
    %1372 = vrot.lane.b32.xlu0 %v1356, 8
    %v1373 = vpop.permute.xlu0 %1372
    %1374 = vrot.lane.b32.xlu0 %v1357, 8
    %v1375 = vpop.permute.xlu0 %1374
    %1376 = vrot.lane.b32.xlu0 %v1358, 8
    %v1377 = vpop.permute.xlu0 %1376
    %1378 = vrot.lane.b32.xlu0 %v1359, 8
    %v1379 = vpop.permute.xlu0 %1378
    %1380 = vrot.lane.b32.xlu0 %v1360, 8
    %v1381 = vpop.permute.xlu0 %1380
    %1382 = vrot.lane.b32.xlu0 %v1361, 8
    %v1383 = vpop.permute.xlu0 %1382
    %1384 = vrot.lane.b32.xlu0 %v1362, 8
    %v1385 = vpop.permute.xlu0 %1384
    %1386 = vrot.lane.b32.xlu0 %v1363, 8
    %v1387 = vpop.permute.xlu0 %1386
    %v1396 = vsel %vm218, %v1348, %v1373
    %v1397 = vsel %vm218, %v1349, %v1375
    %v1398 = vsel %vm218, %v1350, %v1377
    %v1399 = vsel %vm218, %v1351, %v1379
    %v1400 = vsel %vm218, %v1352, %v1381
    %v1401 = vsel %vm218, %v1353, %v1383
    %v1402 = vsel %vm218, %v1354, %v1385
    %v1403 = vsel %vm218, %v1355, %v1387
    %1404 = vmatpush.msra.mxu0 0.0
    %1405 = vmatpush.msra.mxu0 0.0
    %1406 = vmatpush.msra.mxu0 0.0
    %1407 = vmatpush.msra.mxu0 0.0
    %1408 = vmatpush.msra.mxu0 0.0
    %1409 = vmatpush.msra.mxu0 0.0
    %1410 = vmatpush.msra.mxu0 0.0
    %1411 = vmatpush.msra.mxu0 0.0
    %1412 = vmatpush.msra.mxu0 %v1403
    %1413 = vmatpush.msra.mxu0 %v1402
    %1414 = vmatpush.msra.mxu0 %v1401
    %1415 = vmatpush.msra.mxu0 %v1400
    %1416 = vmatpush.msra.mxu0 %v1399
    %1417 = vmatpush.msra.mxu0 %v1398
    %1418 = vmatpush.msra.mxu0 %v1397
    %1419 = vmatpush.msra.mxu0 %v1396
    %1420 = vmatmul.f32.gmra.mxu0 %v990
    %v1421 = vpop.f32.mrf.mxu0
    %v1422 = vadd.f32 0.0, %v1421
    %1423 = vmatmul.f32.gmra.mxu0 %v993
    %v1424 = vpop.f32.mrf.mxu0
    %v1425 = vadd.f32 0.0, %v1424
    %1426 = vmatmul.f32.gmra.mxu0 %v996
    %v1427 = vpop.f32.mrf.mxu0
    %v1428 = vadd.f32 0.0, %v1427
    %1429 = vmatmul.f32.gmra.mxu0 %v999
    %v1430 = vpop.f32.mrf.mxu0
    %v1431 = vadd.f32 0.0, %v1430
    %1432 = vmatmul.f32.gmra.mxu0 %v1002
    %v1433 = vpop.f32.mrf.mxu0
    %v1434 = vadd.f32 0.0, %v1433
    %1435 = vmatmul.f32.gmra.mxu0 %v1005
    %v1436 = vpop.f32.mrf.mxu0
    %v1437 = vadd.f32 0.0, %v1436
    %1438 = vmatmul.f32.gmra.mxu0 %v1008
    %v1439 = vpop.f32.mrf.mxu0
    %v1440 = vadd.f32 0.0, %v1439
    %1441 = vmatmul.f32.gmra.mxu0 %v1011
    %v1442 = vpop.f32.mrf.mxu0
    %v1443 = vadd.f32 0.0, %v1442
    %1444 = vdwg.mxu0
    %v1445 = vsel %vm218, %v1422, 0.0
    %1446 = vadd.xlane.f32.xlu0 %v1445
    %v1447 = vpop.xlane.xlu0 %1446
    %v1448 = vsel %vm218, %v1425, 0.0
    %1449 = vadd.xlane.f32.xlu0 %v1448
    %v1450 = vpop.xlane.xlu0 %1449
    %v1451 = vsel %vm218, %v1428, 0.0
    %1452 = vadd.xlane.f32.xlu0 %v1451
    %v1453 = vpop.xlane.xlu0 %1452
    %v1454 = vsel %vm218, %v1431, 0.0
    %1455 = vadd.xlane.f32.xlu0 %v1454
    %v1456 = vpop.xlane.xlu0 %1455
    %v1457 = vsel %vm218, %v1434, 0.0
    %1458 = vadd.xlane.f32.xlu0 %v1457
    %v1459 = vpop.xlane.xlu0 %1458
    %v1460 = vsel %vm218, %v1437, 0.0
    %1461 = vadd.xlane.f32.xlu0 %v1460
    %v1462 = vpop.xlane.xlu0 %1461
    %v1463 = vsel %vm218, %v1440, 0.0
    %1464 = vadd.xlane.f32.xlu0 %v1463
    %v1465 = vpop.xlane.xlu0 %1464
    %v1466 = vsel %vm218, %v1443, 0.0
    %1467 = vadd.xlane.f32.xlu0 %v1466
    %v1468 = vpop.xlane.xlu0 %1467
    %1477 = vrot.lane.b32.xlu0 %v1422, 120
    %v1478 = vpop.permute.xlu0 %1477
    %1479 = vrot.lane.b32.xlu0 %v1425, 120
    %v1480 = vpop.permute.xlu0 %1479
    %1481 = vrot.lane.b32.xlu0 %v1428, 120
    %v1482 = vpop.permute.xlu0 %1481
    %1483 = vrot.lane.b32.xlu0 %v1431, 120
    %v1484 = vpop.permute.xlu0 %1483
    %1485 = vrot.lane.b32.xlu0 %v1434, 120
    %v1486 = vpop.permute.xlu0 %1485
    %1487 = vrot.lane.b32.xlu0 %v1437, 120
    %v1488 = vpop.permute.xlu0 %1487
    %1489 = vrot.lane.b32.xlu0 %v1440, 120
    %v1490 = vpop.permute.xlu0 %1489
    %1491 = vrot.lane.b32.xlu0 %v1443, 120
    %v1492 = vpop.permute.xlu0 %1491
    %v1501 = vsel %vm218, %v1478, 0.0
    %1502 = vadd.xlane.f32.xlu0 %v1501
    %v1503 = vpop.xlane.xlu0 %1502
    %v1504 = vsel %vm218, %v1480, 0.0
    %1505 = vadd.xlane.f32.xlu0 %v1504
    %v1506 = vpop.xlane.xlu0 %1505
    %v1507 = vsel %vm218, %v1482, 0.0
    %1508 = vadd.xlane.f32.xlu0 %v1507
    %v1509 = vpop.xlane.xlu0 %1508
    %v1510 = vsel %vm218, %v1484, 0.0
    %1511 = vadd.xlane.f32.xlu0 %v1510
    %v1512 = vpop.xlane.xlu0 %1511
    %v1513 = vsel %vm218, %v1486, 0.0
    %1514 = vadd.xlane.f32.xlu0 %v1513
    %v1515 = vpop.xlane.xlu0 %1514
    %v1516 = vsel %vm218, %v1488, 0.0
    %1517 = vadd.xlane.f32.xlu0 %v1516
    %v1518 = vpop.xlane.xlu0 %1517
    %v1519 = vsel %vm218, %v1490, 0.0
    %1520 = vadd.xlane.f32.xlu0 %v1519
    %v1521 = vpop.xlane.xlu0 %1520
    %v1522 = vsel %vm218, %v1492, 0.0
    %1523 = vadd.xlane.f32.xlu0 %v1522
    %v1524 = vpop.xlane.xlu0 %1523
    %v1525 = vmul.f32 %v1447, %v1447
    %v1526 = vmul.f32 %v1450, %v1450
    %v1527 = vmul.f32 %v1453, %v1453
    %v1528 = vmul.f32 %v1456, %v1456
    %v1529 = vmul.f32 %v1459, %v1459
    %v1530 = vmul.f32 %v1462, %v1462
    %v1531 = vmul.f32 %v1465, %v1465
    %v1532 = vmul.f32 %v1468, %v1468
    %v1533 = vsub.f32 %v1503, %v1525
    %v1534 = vsub.f32 %v1506, %v1526
    %v1535 = vsub.f32 %v1509, %v1527
    %v1536 = vsub.f32 %v1512, %v1528
    %v1537 = vsub.f32 %v1515, %v1529
    %v1538 = vsub.f32 %v1518, %v1530
    %v1539 = vsub.f32 %v1521, %v1531
    %v1540 = vsub.f32 %v1524, %v1532
    %v1541 = vadd.f32 %v1533, 1e-05
    %v1542 = vadd.f32 %v1534, 1e-05
    %v1543 = vadd.f32 %v1535, 1e-05
    %v1544 = vadd.f32 %v1536, 1e-05
    %v1545 = vadd.f32 %v1537, 1e-05
    %v1546 = vadd.f32 %v1538, 1e-05
    %v1547 = vadd.f32 %v1539, 1e-05
    %v1548 = vadd.f32 %v1540, 1e-05
    %v1549 = vrsqrt.pop %v1541
    %v1550 = vmul.f32 %v1549, %v1541
    %v1551 = vmul.f32 %v1550, %v1549
    %v1552 = vmul.f32 0.5, %v1551
    %v1553 = vsub.f32 1.5, %v1552
    %v1554 = vmul.f32 %v1549, %v1553
    %vm1555 = vweird.f32 %v1541
    %vm1556 = vweird.f32 %v1549
    %vm1557 = vmor %vm1555, %vm1556
    %v1558 = vsel %vm1557, %v1549, %v1554
    %v1559 = vrsqrt.pop %v1542
    %v1560 = vmul.f32 %v1559, %v1542
    %v1561 = vmul.f32 %v1560, %v1559
    %v1562 = vmul.f32 0.5, %v1561
    %v1563 = vsub.f32 1.5, %v1562
    %v1564 = vmul.f32 %v1559, %v1563
    %vm1565 = vweird.f32 %v1542
    %vm1566 = vweird.f32 %v1559
    %vm1567 = vmor %vm1565, %vm1566
    %v1568 = vsel %vm1567, %v1559, %v1564
    %v1569 = vrsqrt.pop %v1543
    %v1570 = vmul.f32 %v1569, %v1543
    %v1571 = vmul.f32 %v1570, %v1569
    %v1572 = vmul.f32 0.5, %v1571
    %v1573 = vsub.f32 1.5, %v1572
    %v1574 = vmul.f32 %v1569, %v1573
    %vm1575 = vweird.f32 %v1543
    %vm1576 = vweird.f32 %v1569
    %vm1577 = vmor %vm1575, %vm1576
    %v1578 = vsel %vm1577, %v1569, %v1574
    %v1579 = vrsqrt.pop %v1544
    %v1580 = vmul.f32 %v1579, %v1544
    %v1581 = vmul.f32 %v1580, %v1579
    %v1582 = vmul.f32 0.5, %v1581
    %v1583 = vsub.f32 1.5, %v1582
    %v1584 = vmul.f32 %v1579, %v1583
    %vm1585 = vweird.f32 %v1544
    %vm1586 = vweird.f32 %v1579
    %vm1587 = vmor %vm1585, %vm1586
    %v1588 = vsel %vm1587, %v1579, %v1584
    %v1589 = vrsqrt.pop %v1545
    %v1590 = vmul.f32 %v1589, %v1545
    %v1591 = vmul.f32 %v1590, %v1589
    %v1592 = vmul.f32 0.5, %v1591
    %v1593 = vsub.f32 1.5, %v1592
    %v1594 = vmul.f32 %v1589, %v1593
    %vm1595 = vweird.f32 %v1545
    %vm1596 = vweird.f32 %v1589
    %vm1597 = vmor %vm1595, %vm1596
    %v1598 = vsel %vm1597, %v1589, %v1594
    %v1599 = vrsqrt.pop %v1546
    %v1600 = vmul.f32 %v1599, %v1546
    %v1601 = vmul.f32 %v1600, %v1599
    %v1602 = vmul.f32 0.5, %v1601
    %v1603 = vsub.f32 1.5, %v1602
    %v1604 = vmul.f32 %v1599, %v1603
    %vm1605 = vweird.f32 %v1546
    %vm1606 = vweird.f32 %v1599
    %vm1607 = vmor %vm1605, %vm1606
    %v1608 = vsel %vm1607, %v1599, %v1604
    %v1609 = vrsqrt.pop %v1547
    %v1610 = vmul.f32 %v1609, %v1547
    %v1611 = vmul.f32 %v1610, %v1609
    %v1612 = vmul.f32 0.5, %v1611
    %v1613 = vsub.f32 1.5, %v1612
    %v1614 = vmul.f32 %v1609, %v1613
    %vm1615 = vweird.f32 %v1547
    %vm1616 = vweird.f32 %v1609
    %vm1617 = vmor %vm1615, %vm1616
    %v1618 = vsel %vm1617, %v1609, %v1614
    %v1619 = vrsqrt.pop %v1548
    %v1620 = vmul.f32 %v1619, %v1548
    %v1621 = vmul.f32 %v1620, %v1619
    %v1622 = vmul.f32 0.5, %v1621
    %v1623 = vsub.f32 1.5, %v1622
    %v1624 = vmul.f32 %v1619, %v1623
    %vm1625 = vweird.f32 %v1548
    %vm1626 = vweird.f32 %v1619
    %vm1627 = vmor %vm1625, %vm1626
    %v1628 = vsel %vm1627, %v1619, %v1624
    %v1629 = vsub.f32 %v1348, %v1447
    %v1630 = vsub.f32 %v1349, %v1450
    %v1631 = vsub.f32 %v1350, %v1453
    %v1632 = vsub.f32 %v1351, %v1456
    %v1633 = vsub.f32 %v1352, %v1459
    %v1634 = vsub.f32 %v1353, %v1462
    %v1635 = vsub.f32 %v1354, %v1465
    %v1636 = vsub.f32 %v1355, %v1468
    %v1637 = vmul.f32 %v1629, %v1558
    %v1638 = vmul.f32 %v1630, %v1568
    %v1639 = vmul.f32 %v1631, %v1578
    %v1640 = vmul.f32 %v1632, %v1588
    %v1641 = vmul.f32 %v1633, %v1598
    %v1642 = vmul.f32 %v1634, %v1608
    %v1643 = vmul.f32 %v1635, %v1618
    %v1644 = vmul.f32 %v1636, %v1628
    %v1645 = vmul.f32 %v1637, %v939
    %v1646 = vmul.f32 %v1638, %v939
    %v1647 = vmul.f32 %v1639, %v939
    %v1648 = vmul.f32 %v1640, %v939
    %v1649 = vmul.f32 %v1641, %v939
    %v1650 = vmul.f32 %v1642, %v939
    %v1651 = vmul.f32 %v1643, %v939
    %v1652 = vmul.f32 %v1644, %v939
    %v1653 = vadd.f32 %v1645, %v940
    %v1654 = vadd.f32 %v1646, %v940
    %v1655 = vadd.f32 %v1647, %v940
    %v1656 = vadd.f32 %v1648, %v940
    %v1657 = vadd.f32 %v1649, %v940
    %v1658 = vadd.f32 %v1650, %v940
    %v1659 = vadd.f32 %v1651, %v940
    %v1660 = vadd.f32 %v1652, %v940
    %1661 = vst.msk [vmem:[%s12] sm:$0xff] %vm218, %v1653
    %1662 = vst.msk [vmem:[%s12 + $0x8] sm:$0xff] %vm218, %v1654
    %1663 = vst.msk [vmem:[%s12 + $0x10] sm:$0xff] %vm218, %v1655
    %1664 = vst.msk [vmem:[%s12 + $0x18] sm:$0xff] %vm218, %v1656
    %1665 = vst.msk [vmem:[%s12 + $0x20] sm:$0xff] %vm218, %v1657
    %1666 = vst.msk [vmem:[%s12 + $0x28] sm:$0xff] %vm218, %v1658
    %1667 = vst.msk [vmem:[%s12 + $0x30] sm:$0xff] %vm218, %v1659
    %1668 = vst.msk [vmem:[%s12 + $0x38] sm:$0xff] %vm218, %v1660
    // Predicated region
    $region70: #{tpu_custom_call.1} parent=1 // pred_check
      _
    $region71: #{tpu_custom_call.1} parent=1 // pred_check_branch
      %1670 = sbr.rel (0) target = $region73
    $region72: #{tpu_custom_call.1} parent=1 // pred_region
      _
    $region73: #{tpu_custom_call.1} parent=1 // pred_fallthru
      _
    // Predicated region
    $region74: #{tpu_custom_call.1} parent=1 // pred_check
      _
    $region75: #{tpu_custom_call.1} parent=1 // pred_check_branch
      %1672 = sbr.rel (0) target = $region77
    $region76: #{tpu_custom_call.1} parent=1 // pred_region
      _
    $region77: #{tpu_custom_call.1} parent=1 // pred_fallthru
      _
    %1673 = vsyncpa [#allocation3], 1
    %1674 = vsyncpa [#allocation5], 1
    %1675 = vsyncpa [#allocation8], 1

</llo_original>
